<compile_context>
chip_gen: v5e
topology: v5e:2x2
jax: 0.10.0
libtpu: 0.0.40
codegen_flags: <defaults>
</compile_context>

<pallas_src>
import jax
import jax.numpy as jnp
from jax.experimental import pallas as pl
from jax.experimental.pallas import tpu as pltpu


def _round_up(n, m):
    return ((n + m - 1) // m) * m


def classification_lstm_forward(x, params):
    """x: (B, T, F) float32 -> (B, 1) float32  (sigmoid(Linear(h_T)))."""
    B, T, F = x.shape
    H = params["w_hh"].shape[1]
    Hp = _round_up(max(H, 128), 128)   # pad each gate to a full 128-lane slab
    OUT_W = 128                        # lane-dense output width

    # ---------------- weight / input layout prep (outside the kernel) -------
    # Gate-padded input->hidden weights: (F, 4*Hp); gate k occupies
    # columns [k*Hp, k*Hp + H), the rest are zeros.
    wih_p = jnp.pad(params["w_ih"].T.reshape(F, 4, H),
                    ((0, 0), (0, 0), (0, Hp - H))).reshape(F, 4 * Hp)
    # Gate-padded hidden->hidden weights: (Hp, 4*Hp); padded h lanes hit
    # zero rows, padded gate lanes are zero columns.
    whh_p = jnp.pad(params["w_hh"].T.reshape(H, 4, H),
                    ((0, Hp - H), (0, 0), (0, Hp - H))).reshape(Hp, 4 * Hp)
    # Fused bias (b_ih + b_hh), gate-padded: (1, 4*Hp).
    b_p = jnp.pad((params["b_ih"] + params["b_hh"]).reshape(4, H),
                  ((0, 0), (0, Hp - H))).reshape(1, 4 * Hp)
    # Lane-dense linear head: real weights/bias in column 0, zeros elsewhere.
    wl_p = jnp.zeros((Hp, OUT_W), jnp.float32).at[:H, 0].set(params["w_lin"][0])
    bl_p = jnp.zeros((1, OUT_W), jnp.float32).at[0, 0].set(params["b_lin"][0])
    # Time-major 2D input so x@Wih for all steps is one matmul and the rows of
    # time step t are B contiguous sublanes:  row index = t*B + b.
    x2d = jnp.transpose(x, (1, 0, 2)).reshape(T * B, F)

    def kernel(x_ref, wih_ref, whh_ref, b_ref, wl_ref, bl_ref, out_ref, xw_sc):
        # One-shot input projection for every time step; bias folded in once
        # (broadcast hoisted out of the recurrence).
        xw_sc[...] = (
            jnp.dot(x_ref[...], wih_ref[...], preferred_element_type=jnp.float32)
            + b_ref[...]
        )

        def step(t, carry):
            h, c = carry
            row = pl.multiple_of(t * B, B)
            xw_t = xw_sc[pl.ds(row, B), :]                          # (B, 4*Hp)
            gates = xw_t + jnp.dot(h, whh_ref[...],
                                   preferred_element_type=jnp.float32)
            # Each gate is a full 128-lane slab -> vreg-aligned slices, no XLU.
            i_g = jax.nn.sigmoid(gates[:, 0 * Hp:1 * Hp])
            f_g = jax.nn.sigmoid(gates[:, 1 * Hp:2 * Hp])
            g_g = jnp.tanh(gates[:, 2 * Hp:3 * Hp])
            o_g = jax.nn.sigmoid(gates[:, 3 * Hp:4 * Hp])
            c_new = f_g * c + i_g * g_g
            h_new = o_g * jnp.tanh(c_new)
            return h_new, c_new

        h0 = jnp.zeros((B, Hp), jnp.float32)
        c0 = jnp.zeros((B, Hp), jnp.float32)
        h_T, _ = jax.lax.fori_loop(0, T, step, (h0, c0), unroll=True)

        logit = (jnp.dot(h_T, wl_ref[...], preferred_element_type=jnp.float32)
                 + bl_ref[...])
        out_ref[...] = jax.nn.sigmoid(logit)

    out = pl.pallas_call(
        kernel,
        out_shape=jax.ShapeDtypeStruct((B, OUT_W), jnp.float32),
        grid_spec=pltpu.PrefetchScalarGridSpec(
            num_scalar_prefetch=0,
            grid=(1,),                                   # single invocation
            in_specs=[
                pl.BlockSpec((T * B, F), lambda i: (0, 0)),
                pl.BlockSpec((F, 4 * Hp), lambda i: (0, 0)),
                pl.BlockSpec((Hp, 4 * Hp), lambda i: (0, 0)),
                pl.BlockSpec((1, 4 * Hp), lambda i: (0, 0)),
                pl.BlockSpec((Hp, OUT_W), lambda i: (0, 0)),
                pl.BlockSpec((1, OUT_W), lambda i: (0, 0)),
            ],
            out_specs=pl.BlockSpec((B, OUT_W), lambda i: (0, 0)),
            scratch_shapes=[pltpu.VMEM((T * B, 4 * Hp), jnp.float32)],
        ),
        compiler_params=pltpu.CompilerParams(
            dimension_semantics=("arbitrary",),
        ),
    )(x2d, wih_p, whh_p, b_p, wl_p, bl_p)

    return out[:, 0:1]


def reference_forward(x, params):
    """Pure-JAX reference of the PyTorch forward (num_layers=1)."""
    B, T, F = x.shape
    H = params["w_hh"].shape[1]
    h = jnp.zeros((B, H), jnp.float32)
    c = jnp.zeros((B, H), jnp.float32)
    b = params["b_ih"] + params["b_hh"]
    for t in range(T):
        gates = x[:, t, :] @ params["w_ih"].T + h @ params["w_hh"].T + b
        i_g = jax.nn.sigmoid(gates[:, 0 * H:1 * H])
        f_g = jax.nn.sigmoid(gates[:, 1 * H:2 * H])
        g_g = jnp.tanh(gates[:, 2 * H:3 * H])
        o_g = jax.nn.sigmoid(gates[:, 3 * H:4 * H])
        c = f_g * c + i_g * g_g
        h = o_g * jnp.tanh(c)
    return jax.nn.sigmoid(h @ params["w_lin"].T + params["b_lin"])


def init_params(key, n_features, hidden_units):
    """Deterministic init matching PyTorch shapes: U(-1/sqrt(H), 1/sqrt(H))."""
    H = hidden_units
    k = 1.0 / jnp.sqrt(jnp.float32(H))
    keys = jax.random.split(key, 6)
    u = lambda kk, shape: jax.random.uniform(kk, shape, jnp.float32, -k, k)
    return {
        "w_ih": u(keys[0], (4 * H, n_features)),
        "w_hh": u(keys[1], (4 * H, H)),
        "b_ih": u(keys[2], (4 * H,)),
        "b_hh": u(keys[3], (4 * H,)),
        "w_lin": u(keys[4], (1, H)),
        "b_lin": u(keys[5], (1,)),
    }


if __name__ == "__main__":
    B, T, F, H = 8, 8, 8, 32  # batch, seq_len, n_features, hidden_units

    key = jax.random.PRNGKey(0)
    k_x, k_p = jax.random.split(key)
    x = jax.random.normal(k_x, (B, T, F), jnp.float32)
    params = init_params(k_p, n_features=F, hidden_units=H)

    out = classification_lstm_forward(x, params)
    out = jax.block_until_ready(out)

    ref = reference_forward(x, params)
    assert out.shape == (B, 1)
    assert jnp.allclose(out, ref, atol=1e-5, rtol=1e-5), (out, ref)

    print("KERNEL_OK")
</pallas_src>

<mosaic_0001>
module attributes {stable_mosaic.version = 11 : i64} {
  func.func @kernel(%arg0: i32, %arg1: memref<64x8xf32, #tpu.memory_space<vmem>>, %arg2: memref<8x512xf32, #tpu.memory_space<vmem>>, %arg3: memref<128x512xf32, #tpu.memory_space<vmem>>, %arg4: memref<1x512xf32, #tpu.memory_space<vmem>>, %arg5: memref<128x128xf32, #tpu.memory_space<vmem>>, %arg6: memref<1x128xf32, #tpu.memory_space<vmem>>, %arg7: memref<8x128xf32, #tpu.memory_space<vmem>>, %arg8: memref<64x512xf32, #tpu.memory_space<vmem>>) attributes {dimension_semantics = [#tpu.dimension_semantics<arbitrary>], iteration_bounds = array<i64: 1>, scalar_prefetch = 0 : i64, scratch_operands = 1 : i64, tpu.core_type = #tpu.core_type<tc>, window_params = [{pipeline_mode = #tpu.pipeline_mode<synchronous>, transform_indices = @transform_0, window_bounds = array<i64: 64, 8>}, {pipeline_mode = #tpu.pipeline_mode<synchronous>, transform_indices = @transform_1, window_bounds = array<i64: 8, 512>}, {pipeline_mode = #tpu.pipeline_mode<synchronous>, transform_indices = @transform_2, window_bounds = array<i64: 128, 512>}, {pipeline_mode = #tpu.pipeline_mode<synchronous>, transform_indices = @transform_3, window_bounds = array<i64: 1, 512>}, {pipeline_mode = #tpu.pipeline_mode<synchronous>, transform_indices = @transform_4, window_bounds = array<i64: 128, 128>}, {pipeline_mode = #tpu.pipeline_mode<synchronous>, transform_indices = @transform_5, window_bounds = array<i64: 1, 128>}, {pipeline_mode = #tpu.pipeline_mode<synchronous>, transform_indices = @transform_6, window_bounds = array<i64: 8, 128>}]} {
    %c0 = arith.constant 0 : index
    %c0_0 = arith.constant 0 : index
    %0 = vector.load %arg1[%c0, %c0_0] : memref<64x8xf32, #tpu.memory_space<vmem>>, vector<64x8xf32>
    %c0_1 = arith.constant 0 : index
    %c0_2 = arith.constant 0 : index
    %1 = vector.load %arg2[%c0_1, %c0_2] : memref<8x512xf32, #tpu.memory_space<vmem>>, vector<8x512xf32>
    %cst = arith.constant dense<0.000000e+00> : vector<64x512xf32>
    %2 = tpu.matmul %0, %1, %cst {dimension_numbers = #tpu.dot_dimension_numbers<[1], [0], [0], [1], [0, 0, 1, 1], [], []>} : vector<64x8xf32>, vector<8x512xf32>, vector<64x512xf32> -> vector<64x512xf32>
    %c0_3 = arith.constant 0 : index
    %c0_4 = arith.constant 0 : index
    %3 = vector.load %arg4[%c0_3, %c0_4] : memref<1x512xf32, #tpu.memory_space<vmem>>, vector<1x512xf32>
    %4 = vector.broadcast %3 : vector<1x512xf32> to vector<64x512xf32>
    %5 = arith.addf %2, %4 : vector<64x512xf32>
    %c0_5 = arith.constant 0 : index
    %c0_6 = arith.constant 0 : index
    %6 = vector.load %arg8[%c0_5, %c0_6] : memref<64x512xf32, #tpu.memory_space<vmem>>, vector<64x512xf32>
    tpu.vector_store %arg8[%c0_5, %c0_6], %5 {strides = array<i32>} : memref<64x512xf32, #tpu.memory_space<vmem>>, vector<64x512xf32>,
    %cst_7 = arith.constant 0.000000e+00 : f32
    %7 = vector.broadcast %cst_7 : f32 to vector<8x128xf32>
    %cst_8 = arith.constant 0.000000e+00 : f32
    %8 = vector.broadcast %cst_8 : f32 to vector<8x128xf32>
    %c0_i32 = arith.constant 0 : i32
    %c8_i32 = arith.constant 8 : i32
    %9 = arith.muli %c0_i32, %c8_i32 : i32
    %10 = tpu.assume_multiple %9, 8 : i32
    %11 = arith.index_cast %10 : i32 to index
    %c0_9 = arith.constant 0 : index
    %12 = vector.load %arg8[%11, %c0_9] : memref<64x512xf32, #tpu.memory_space<vmem>>, vector<8x512xf32>
    %c0_10 = arith.constant 0 : index
    %c0_11 = arith.constant 0 : index
    %13 = vector.load %arg3[%c0_10, %c0_11] : memref<128x512xf32, #tpu.memory_space<vmem>>, vector<128x512xf32>
    %cst_12 = arith.constant dense<0.000000e+00> : vector<8x512xf32>
    %14 = tpu.matmul %7, %13, %cst_12 {dimension_numbers = #tpu.dot_dimension_numbers<[1], [0], [0], [1], [0, 0, 1, 1], [], []>} : vector<8x128xf32>, vector<128x512xf32>, vector<8x512xf32> -> vector<8x512xf32>
    %15 = arith.addf %12, %14 : vector<8x512xf32>
    %16 = vector.extract_strided_slice %15 {offsets = [0, 0], sizes = [8, 128], strides = [1, 1]} : vector<8x512xf32> to vector<8x128xf32>
    %17 = arith.negf %16 : vector<8x128xf32>
    %18 = math.exp %17 : vector<8x128xf32>
    %cst_13 = arith.constant 1.000000e+00 : f32
    %19 = vector.broadcast %cst_13 : f32 to vector<8x128xf32>
    %20 = arith.addf %19, %18 : vector<8x128xf32>
    %21 = arith.divf %19, %20 : vector<8x128xf32>
    %22 = vector.extract_strided_slice %15 {offsets = [0, 128], sizes = [8, 128], strides = [1, 1]} : vector<8x512xf32> to vector<8x128xf32>
    %23 = arith.negf %22 : vector<8x128xf32>
    %24 = math.exp %23 : vector<8x128xf32>
    %cst_14 = arith.constant 1.000000e+00 : f32
    %25 = vector.broadcast %cst_14 : f32 to vector<8x128xf32>
    %26 = arith.addf %25, %24 : vector<8x128xf32>
    %27 = arith.divf %25, %26 : vector<8x128xf32>
    %28 = vector.extract_strided_slice %15 {offsets = [0, 256], sizes = [8, 128], strides = [1, 1]} : vector<8x512xf32> to vector<8x128xf32>
    %29 = math.tanh %28 : vector<8x128xf32>
    %30 = vector.extract_strided_slice %15 {offsets = [0, 384], sizes = [8, 128], strides = [1, 1]} : vector<8x512xf32> to vector<8x128xf32>
    %31 = arith.negf %30 : vector<8x128xf32>
    %32 = math.exp %31 : vector<8x128xf32>
    %cst_15 = arith.constant 1.000000e+00 : f32
    %33 = vector.broadcast %cst_15 : f32 to vector<8x128xf32>
    %34 = arith.addf %33, %32 : vector<8x128xf32>
    %35 = arith.divf %33, %34 : vector<8x128xf32>
    %36 = arith.mulf %27, %8 : vector<8x128xf32>
    %37 = arith.mulf %21, %29 : vector<8x128xf32>
    %38 = arith.addf %36, %37 : vector<8x128xf32>
    %39 = math.tanh %38 : vector<8x128xf32>
    %40 = arith.mulf %35, %39 : vector<8x128xf32>
    %c1_i32 = arith.constant 1 : i32
    %c8_i32_16 = arith.constant 8 : i32
    %41 = arith.muli %c1_i32, %c8_i32_16 : i32
    %42 = tpu.assume_multiple %41, 8 : i32
    %43 = arith.index_cast %42 : i32 to index
    %c0_17 = arith.constant 0 : index
    %44 = vector.load %arg8[%43, %c0_17] : memref<64x512xf32, #tpu.memory_space<vmem>>, vector<8x512xf32>
    %c0_18 = arith.constant 0 : index
    %c0_19 = arith.constant 0 : index
    %45 = vector.load %arg3[%c0_18, %c0_19] : memref<128x512xf32, #tpu.memory_space<vmem>>, vector<128x512xf32>
    %cst_20 = arith.constant dense<0.000000e+00> : vector<8x512xf32>
    %46 = tpu.matmul %40, %45, %cst_20 {dimension_numbers = #tpu.dot_dimension_numbers<[1], [0], [0], [1], [0, 0, 1, 1], [], []>} : vector<8x128xf32>, vector<128x512xf32>, vector<8x512xf32> -> vector<8x512xf32>
    %47 = arith.addf %44, %46 : vector<8x512xf32>
    %48 = vector.extract_strided_slice %47 {offsets = [0, 0], sizes = [8, 128], strides = [1, 1]} : vector<8x512xf32> to vector<8x128xf32>
    %49 = arith.negf %48 : vector<8x128xf32>
    %50 = math.exp %49 : vector<8x128xf32>
    %cst_21 = arith.constant 1.000000e+00 : f32
    %51 = vector.broadcast %cst_21 : f32 to vector<8x128xf32>
    %52 = arith.addf %51, %50 : vector<8x128xf32>
    %53 = arith.divf %51, %52 : vector<8x128xf32>
    %54 = vector.extract_strided_slice %47 {offsets = [0, 128], sizes = [8, 128], strides = [1, 1]} : vector<8x512xf32> to vector<8x128xf32>
    %55 = arith.negf %54 : vector<8x128xf32>
    %56 = math.exp %55 : vector<8x128xf32>
    %cst_22 = arith.constant 1.000000e+00 : f32
    %57 = vector.broadcast %cst_22 : f32 to vector<8x128xf32>
    %58 = arith.addf %57, %56 : vector<8x128xf32>
    %59 = arith.divf %57, %58 : vector<8x128xf32>
    %60 = vector.extract_strided_slice %47 {offsets = [0, 256], sizes = [8, 128], strides = [1, 1]} : vector<8x512xf32> to vector<8x128xf32>
    %61 = math.tanh %60 : vector<8x128xf32>
    %62 = vector.extract_strided_slice %47 {offsets = [0, 384], sizes = [8, 128], strides = [1, 1]} : vector<8x512xf32> to vector<8x128xf32>
    %63 = arith.negf %62 : vector<8x128xf32>
    %64 = math.exp %63 : vector<8x128xf32>
    %cst_23 = arith.constant 1.000000e+00 : f32
    %65 = vector.broadcast %cst_23 : f32 to vector<8x128xf32>
    %66 = arith.addf %65, %64 : vector<8x128xf32>
    %67 = arith.divf %65, %66 : vector<8x128xf32>
    %68 = arith.mulf %59, %38 : vector<8x128xf32>
    %69 = arith.mulf %53, %61 : vector<8x128xf32>
    %70 = arith.addf %68, %69 : vector<8x128xf32>
    %71 = math.tanh %70 : vector<8x128xf32>
    %72 = arith.mulf %67, %71 : vector<8x128xf32>
    %c2_i32 = arith.constant 2 : i32
    %c8_i32_24 = arith.constant 8 : i32
    %73 = arith.muli %c2_i32, %c8_i32_24 : i32
    %74 = tpu.assume_multiple %73, 8 : i32
    %75 = arith.index_cast %74 : i32 to index
    %c0_25 = arith.constant 0 : index
    %76 = vector.load %arg8[%75, %c0_25] : memref<64x512xf32, #tpu.memory_space<vmem>>, vector<8x512xf32>
    %c0_26 = arith.constant 0 : index
    %c0_27 = arith.constant 0 : index
    %77 = vector.load %arg3[%c0_26, %c0_27] : memref<128x512xf32, #tpu.memory_space<vmem>>, vector<128x512xf32>
    %cst_28 = arith.constant dense<0.000000e+00> : vector<8x512xf32>
    %78 = tpu.matmul %72, %77, %cst_28 {dimension_numbers = #tpu.dot_dimension_numbers<[1], [0], [0], [1], [0, 0, 1, 1], [], []>} : vector<8x128xf32>, vector<128x512xf32>, vector<8x512xf32> -> vector<8x512xf32>
    %79 = arith.addf %76, %78 : vector<8x512xf32>
    %80 = vector.extract_strided_slice %79 {offsets = [0, 0], sizes = [8, 128], strides = [1, 1]} : vector<8x512xf32> to vector<8x128xf32>
    %81 = arith.negf %80 : vector<8x128xf32>
    %82 = math.exp %81 : vector<8x128xf32>
    %cst_29 = arith.constant 1.000000e+00 : f32
    %83 = vector.broadcast %cst_29 : f32 to vector<8x128xf32>
    %84 = arith.addf %83, %82 : vector<8x128xf32>
    %85 = arith.divf %83, %84 : vector<8x128xf32>
    %86 = vector.extract_strided_slice %79 {offsets = [0, 128], sizes = [8, 128], strides = [1, 1]} : vector<8x512xf32> to vector<8x128xf32>
    %87 = arith.negf %86 : vector<8x128xf32>
    %88 = math.exp %87 : vector<8x128xf32>
    %cst_30 = arith.constant 1.000000e+00 : f32
    %89 = vector.broadcast %cst_30 : f32 to vector<8x128xf32>
    %90 = arith.addf %89, %88 : vector<8x128xf32>
    %91 = arith.divf %89, %90 : vector<8x128xf32>
    %92 = vector.extract_strided_slice %79 {offsets = [0, 256], sizes = [8, 128], strides = [1, 1]} : vector<8x512xf32> to vector<8x128xf32>
    %93 = math.tanh %92 : vector<8x128xf32>
    %94 = vector.extract_strided_slice %79 {offsets = [0, 384], sizes = [8, 128], strides = [1, 1]} : vector<8x512xf32> to vector<8x128xf32>
    %95 = arith.negf %94 : vector<8x128xf32>
    %96 = math.exp %95 : vector<8x128xf32>
    %cst_31 = arith.constant 1.000000e+00 : f32
    %97 = vector.broadcast %cst_31 : f32 to vector<8x128xf32>
    %98 = arith.addf %97, %96 : vector<8x128xf32>
    %99 = arith.divf %97, %98 : vector<8x128xf32>
    %100 = arith.mulf %91, %70 : vector<8x128xf32>
    %101 = arith.mulf %85, %93 : vector<8x128xf32>
    %102 = arith.addf %100, %101 : vector<8x128xf32>
    %103 = math.tanh %102 : vector<8x128xf32>
    %104 = arith.mulf %99, %103 : vector<8x128xf32>
    %c3_i32 = arith.constant 3 : i32
    %c8_i32_32 = arith.constant 8 : i32
    %105 = arith.muli %c3_i32, %c8_i32_32 : i32
    %106 = tpu.assume_multiple %105, 8 : i32
    %107 = arith.index_cast %106 : i32 to index
    %c0_33 = arith.constant 0 : index
    %108 = vector.load %arg8[%107, %c0_33] : memref<64x512xf32, #tpu.memory_space<vmem>>, vector<8x512xf32>
    %c0_34 = arith.constant 0 : index
    %c0_35 = arith.constant 0 : index
    %109 = vector.load %arg3[%c0_34, %c0_35] : memref<128x512xf32, #tpu.memory_space<vmem>>, vector<128x512xf32>
    %cst_36 = arith.constant dense<0.000000e+00> : vector<8x512xf32>
    %110 = tpu.matmul %104, %109, %cst_36 {dimension_numbers = #tpu.dot_dimension_numbers<[1], [0], [0], [1], [0, 0, 1, 1], [], []>} : vector<8x128xf32>, vector<128x512xf32>, vector<8x512xf32> -> vector<8x512xf32>
    %111 = arith.addf %108, %110 : vector<8x512xf32>
    %112 = vector.extract_strided_slice %111 {offsets = [0, 0], sizes = [8, 128], strides = [1, 1]} : vector<8x512xf32> to vector<8x128xf32>
    %113 = arith.negf %112 : vector<8x128xf32>
    %114 = math.exp %113 : vector<8x128xf32>
    %cst_37 = arith.constant 1.000000e+00 : f32
    %115 = vector.broadcast %cst_37 : f32 to vector<8x128xf32>
    %116 = arith.addf %115, %114 : vector<8x128xf32>
    %117 = arith.divf %115, %116 : vector<8x128xf32>
    %118 = vector.extract_strided_slice %111 {offsets = [0, 128], sizes = [8, 128], strides = [1, 1]} : vector<8x512xf32> to vector<8x128xf32>
    %119 = arith.negf %118 : vector<8x128xf32>
    %120 = math.exp %119 : vector<8x128xf32>
    %cst_38 = arith.constant 1.000000e+00 : f32
    %121 = vector.broadcast %cst_38 : f32 to vector<8x128xf32>
    %122 = arith.addf %121, %120 : vector<8x128xf32>
    %123 = arith.divf %121, %122 : vector<8x128xf32>
    %124 = vector.extract_strided_slice %111 {offsets = [0, 256], sizes = [8, 128], strides = [1, 1]} : vector<8x512xf32> to vector<8x128xf32>
    %125 = math.tanh %124 : vector<8x128xf32>
    %126 = vector.extract_strided_slice %111 {offsets = [0, 384], sizes = [8, 128], strides = [1, 1]} : vector<8x512xf32> to vector<8x128xf32>
    %127 = arith.negf %126 : vector<8x128xf32>
    %128 = math.exp %127 : vector<8x128xf32>
    %cst_39 = arith.constant 1.000000e+00 : f32
    %129 = vector.broadcast %cst_39 : f32 to vector<8x128xf32>
    %130 = arith.addf %129, %128 : vector<8x128xf32>
    %131 = arith.divf %129, %130 : vector<8x128xf32>
    %132 = arith.mulf %123, %102 : vector<8x128xf32>
    %133 = arith.mulf %117, %125 : vector<8x128xf32>
    %134 = arith.addf %132, %133 : vector<8x128xf32>
    %135 = math.tanh %134 : vector<8x128xf32>
    %136 = arith.mulf %131, %135 : vector<8x128xf32>
    %c4_i32 = arith.constant 4 : i32
    %c8_i32_40 = arith.constant 8 : i32
    %137 = arith.muli %c4_i32, %c8_i32_40 : i32
    %138 = tpu.assume_multiple %137, 8 : i32
    %139 = arith.index_cast %138 : i32 to index
    %c0_41 = arith.constant 0 : index
    %140 = vector.load %arg8[%139, %c0_41] : memref<64x512xf32, #tpu.memory_space<vmem>>, vector<8x512xf32>
    %c0_42 = arith.constant 0 : index
    %c0_43 = arith.constant 0 : index
    %141 = vector.load %arg3[%c0_42, %c0_43] : memref<128x512xf32, #tpu.memory_space<vmem>>, vector<128x512xf32>
    %cst_44 = arith.constant dense<0.000000e+00> : vector<8x512xf32>
    %142 = tpu.matmul %136, %141, %cst_44 {dimension_numbers = #tpu.dot_dimension_numbers<[1], [0], [0], [1], [0, 0, 1, 1], [], []>} : vector<8x128xf32>, vector<128x512xf32>, vector<8x512xf32> -> vector<8x512xf32>
    %143 = arith.addf %140, %142 : vector<8x512xf32>
    %144 = vector.extract_strided_slice %143 {offsets = [0, 0], sizes = [8, 128], strides = [1, 1]} : vector<8x512xf32> to vector<8x128xf32>
    %145 = arith.negf %144 : vector<8x128xf32>
    %146 = math.exp %145 : vector<8x128xf32>
    %cst_45 = arith.constant 1.000000e+00 : f32
    %147 = vector.broadcast %cst_45 : f32 to vector<8x128xf32>
    %148 = arith.addf %147, %146 : vector<8x128xf32>
    %149 = arith.divf %147, %148 : vector<8x128xf32>
    %150 = vector.extract_strided_slice %143 {offsets = [0, 128], sizes = [8, 128], strides = [1, 1]} : vector<8x512xf32> to vector<8x128xf32>
    %151 = arith.negf %150 : vector<8x128xf32>
    %152 = math.exp %151 : vector<8x128xf32>
    %cst_46 = arith.constant 1.000000e+00 : f32
    %153 = vector.broadcast %cst_46 : f32 to vector<8x128xf32>
    %154 = arith.addf %153, %152 : vector<8x128xf32>
    %155 = arith.divf %153, %154 : vector<8x128xf32>
    %156 = vector.extract_strided_slice %143 {offsets = [0, 256], sizes = [8, 128], strides = [1, 1]} : vector<8x512xf32> to vector<8x128xf32>
    %157 = math.tanh %156 : vector<8x128xf32>
    %158 = vector.extract_strided_slice %143 {offsets = [0, 384], sizes = [8, 128], strides = [1, 1]} : vector<8x512xf32> to vector<8x128xf32>
    %159 = arith.negf %158 : vector<8x128xf32>
    %160 = math.exp %159 : vector<8x128xf32>
    %cst_47 = arith.constant 1.000000e+00 : f32
    %161 = vector.broadcast %cst_47 : f32 to vector<8x128xf32>
    %162 = arith.addf %161, %160 : vector<8x128xf32>
    %163 = arith.divf %161, %162 : vector<8x128xf32>
    %164 = arith.mulf %155, %134 : vector<8x128xf32>
    %165 = arith.mulf %149, %157 : vector<8x128xf32>
    %166 = arith.addf %164, %165 : vector<8x128xf32>
    %167 = math.tanh %166 : vector<8x128xf32>
    %168 = arith.mulf %163, %167 : vector<8x128xf32>
    %c5_i32 = arith.constant 5 : i32
    %c8_i32_48 = arith.constant 8 : i32
    %169 = arith.muli %c5_i32, %c8_i32_48 : i32
    %170 = tpu.assume_multiple %169, 8 : i32
    %171 = arith.index_cast %170 : i32 to index
    %c0_49 = arith.constant 0 : index
    %172 = vector.load %arg8[%171, %c0_49] : memref<64x512xf32, #tpu.memory_space<vmem>>, vector<8x512xf32>
    %c0_50 = arith.constant 0 : index
    %c0_51 = arith.constant 0 : index
    %173 = vector.load %arg3[%c0_50, %c0_51] : memref<128x512xf32, #tpu.memory_space<vmem>>, vector<128x512xf32>
    %cst_52 = arith.constant dense<0.000000e+00> : vector<8x512xf32>
    %174 = tpu.matmul %168, %173, %cst_52 {dimension_numbers = #tpu.dot_dimension_numbers<[1], [0], [0], [1], [0, 0, 1, 1], [], []>} : vector<8x128xf32>, vector<128x512xf32>, vector<8x512xf32> -> vector<8x512xf32>
    %175 = arith.addf %172, %174 : vector<8x512xf32>
    %176 = vector.extract_strided_slice %175 {offsets = [0, 0], sizes = [8, 128], strides = [1, 1]} : vector<8x512xf32> to vector<8x128xf32>
    %177 = arith.negf %176 : vector<8x128xf32>
    %178 = math.exp %177 : vector<8x128xf32>
    %cst_53 = arith.constant 1.000000e+00 : f32
    %179 = vector.broadcast %cst_53 : f32 to vector<8x128xf32>
    %180 = arith.addf %179, %178 : vector<8x128xf32>
    %181 = arith.divf %179, %180 : vector<8x128xf32>
    %182 = vector.extract_strided_slice %175 {offsets = [0, 128], sizes = [8, 128], strides = [1, 1]} : vector<8x512xf32> to vector<8x128xf32>
    %183 = arith.negf %182 : vector<8x128xf32>
    %184 = math.exp %183 : vector<8x128xf32>
    %cst_54 = arith.constant 1.000000e+00 : f32
    %185 = vector.broadcast %cst_54 : f32 to vector<8x128xf32>
    %186 = arith.addf %185, %184 : vector<8x128xf32>
    %187 = arith.divf %185, %186 : vector<8x128xf32>
    %188 = vector.extract_strided_slice %175 {offsets = [0, 256], sizes = [8, 128], strides = [1, 1]} : vector<8x512xf32> to vector<8x128xf32>
    %189 = math.tanh %188 : vector<8x128xf32>
    %190 = vector.extract_strided_slice %175 {offsets = [0, 384], sizes = [8, 128], strides = [1, 1]} : vector<8x512xf32> to vector<8x128xf32>
    %191 = arith.negf %190 : vector<8x128xf32>
    %192 = math.exp %191 : vector<8x128xf32>
    %cst_55 = arith.constant 1.000000e+00 : f32
    %193 = vector.broadcast %cst_55 : f32 to vector<8x128xf32>
    %194 = arith.addf %193, %192 : vector<8x128xf32>
    %195 = arith.divf %193, %194 : vector<8x128xf32>
    %196 = arith.mulf %187, %166 : vector<8x128xf32>
    %197 = arith.mulf %181, %189 : vector<8x128xf32>
    %198 = arith.addf %196, %197 : vector<8x128xf32>
    %199 = math.tanh %198 : vector<8x128xf32>
    %200 = arith.mulf %195, %199 : vector<8x128xf32>
    %c6_i32 = arith.constant 6 : i32
    %c8_i32_56 = arith.constant 8 : i32
    %201 = arith.muli %c6_i32, %c8_i32_56 : i32
    %202 = tpu.assume_multiple %201, 8 : i32
    %203 = arith.index_cast %202 : i32 to index
    %c0_57 = arith.constant 0 : index
    %204 = vector.load %arg8[%203, %c0_57] : memref<64x512xf32, #tpu.memory_space<vmem>>, vector<8x512xf32>
    %c0_58 = arith.constant 0 : index
    %c0_59 = arith.constant 0 : index
    %205 = vector.load %arg3[%c0_58, %c0_59] : memref<128x512xf32, #tpu.memory_space<vmem>>, vector<128x512xf32>
    %cst_60 = arith.constant dense<0.000000e+00> : vector<8x512xf32>
    %206 = tpu.matmul %200, %205, %cst_60 {dimension_numbers = #tpu.dot_dimension_numbers<[1], [0], [0], [1], [0, 0, 1, 1], [], []>} : vector<8x128xf32>, vector<128x512xf32>, vector<8x512xf32> -> vector<8x512xf32>
    %207 = arith.addf %204, %206 : vector<8x512xf32>
    %208 = vector.extract_strided_slice %207 {offsets = [0, 0], sizes = [8, 128], strides = [1, 1]} : vector<8x512xf32> to vector<8x128xf32>
    %209 = arith.negf %208 : vector<8x128xf32>
    %210 = math.exp %209 : vector<8x128xf32>
    %cst_61 = arith.constant 1.000000e+00 : f32
    %211 = vector.broadcast %cst_61 : f32 to vector<8x128xf32>
    %212 = arith.addf %211, %210 : vector<8x128xf32>
    %213 = arith.divf %211, %212 : vector<8x128xf32>
    %214 = vector.extract_strided_slice %207 {offsets = [0, 128], sizes = [8, 128], strides = [1, 1]} : vector<8x512xf32> to vector<8x128xf32>
    %215 = arith.negf %214 : vector<8x128xf32>
    %216 = math.exp %215 : vector<8x128xf32>
    %cst_62 = arith.constant 1.000000e+00 : f32
    %217 = vector.broadcast %cst_62 : f32 to vector<8x128xf32>
    %218 = arith.addf %217, %216 : vector<8x128xf32>
    %219 = arith.divf %217, %218 : vector<8x128xf32>
    %220 = vector.extract_strided_slice %207 {offsets = [0, 256], sizes = [8, 128], strides = [1, 1]} : vector<8x512xf32> to vector<8x128xf32>
    %221 = math.tanh %220 : vector<8x128xf32>
    %222 = vector.extract_strided_slice %207 {offsets = [0, 384], sizes = [8, 128], strides = [1, 1]} : vector<8x512xf32> to vector<8x128xf32>
    %223 = arith.negf %222 : vector<8x128xf32>
    %224 = math.exp %223 : vector<8x128xf32>
    %cst_63 = arith.constant 1.000000e+00 : f32
    %225 = vector.broadcast %cst_63 : f32 to vector<8x128xf32>
    %226 = arith.addf %225, %224 : vector<8x128xf32>
    %227 = arith.divf %225, %226 : vector<8x128xf32>
    %228 = arith.mulf %219, %198 : vector<8x128xf32>
    %229 = arith.mulf %213, %221 : vector<8x128xf32>
    %230 = arith.addf %228, %229 : vector<8x128xf32>
    %231 = math.tanh %230 : vector<8x128xf32>
    %232 = arith.mulf %227, %231 : vector<8x128xf32>
    %c7_i32 = arith.constant 7 : i32
    %c8_i32_64 = arith.constant 8 : i32
    %233 = arith.muli %c7_i32, %c8_i32_64 : i32
    %234 = tpu.assume_multiple %233, 8 : i32
    %235 = arith.index_cast %234 : i32 to index
    %c0_65 = arith.constant 0 : index
    %236 = vector.load %arg8[%235, %c0_65] : memref<64x512xf32, #tpu.memory_space<vmem>>, vector<8x512xf32>
    %c0_66 = arith.constant 0 : index
    %c0_67 = arith.constant 0 : index
    %237 = vector.load %arg3[%c0_66, %c0_67] : memref<128x512xf32, #tpu.memory_space<vmem>>, vector<128x512xf32>
    %cst_68 = arith.constant dense<0.000000e+00> : vector<8x512xf32>
    %238 = tpu.matmul %232, %237, %cst_68 {dimension_numbers = #tpu.dot_dimension_numbers<[1], [0], [0], [1], [0, 0, 1, 1], [], []>} : vector<8x128xf32>, vector<128x512xf32>, vector<8x512xf32> -> vector<8x512xf32>
    %239 = arith.addf %236, %238 : vector<8x512xf32>
    %240 = vector.extract_strided_slice %239 {offsets = [0, 0], sizes = [8, 128], strides = [1, 1]} : vector<8x512xf32> to vector<8x128xf32>
    %241 = arith.negf %240 : vector<8x128xf32>
    %242 = math.exp %241 : vector<8x128xf32>
    %cst_69 = arith.constant 1.000000e+00 : f32
    %243 = vector.broadcast %cst_69 : f32 to vector<8x128xf32>
    %244 = arith.addf %243, %242 : vector<8x128xf32>
    %245 = arith.divf %243, %244 : vector<8x128xf32>
    %246 = vector.extract_strided_slice %239 {offsets = [0, 128], sizes = [8, 128], strides = [1, 1]} : vector<8x512xf32> to vector<8x128xf32>
    %247 = arith.negf %246 : vector<8x128xf32>
    %248 = math.exp %247 : vector<8x128xf32>
    %cst_70 = arith.constant 1.000000e+00 : f32
    %249 = vector.broadcast %cst_70 : f32 to vector<8x128xf32>
    %250 = arith.addf %249, %248 : vector<8x128xf32>
    %251 = arith.divf %249, %250 : vector<8x128xf32>
    %252 = vector.extract_strided_slice %239 {offsets = [0, 256], sizes = [8, 128], strides = [1, 1]} : vector<8x512xf32> to vector<8x128xf32>
    %253 = math.tanh %252 : vector<8x128xf32>
    %254 = vector.extract_strided_slice %239 {offsets = [0, 384], sizes = [8, 128], strides = [1, 1]} : vector<8x512xf32> to vector<8x128xf32>
    %255 = arith.negf %254 : vector<8x128xf32>
    %256 = math.exp %255 : vector<8x128xf32>
    %cst_71 = arith.constant 1.000000e+00 : f32
    %257 = vector.broadcast %cst_71 : f32 to vector<8x128xf32>
    %258 = arith.addf %257, %256 : vector<8x128xf32>
    %259 = arith.divf %257, %258 : vector<8x128xf32>
    %260 = arith.mulf %251, %230 : vector<8x128xf32>
    %261 = arith.mulf %245, %253 : vector<8x128xf32>
    %262 = arith.addf %260, %261 : vector<8x128xf32>
    %263 = math.tanh %262 : vector<8x128xf32>
    %264 = arith.mulf %259, %263 : vector<8x128xf32>
    %c8_i32_72 = arith.constant 8 : i32
    %c0_73 = arith.constant 0 : index
    %c0_74 = arith.constant 0 : index
    %265 = vector.load %arg5[%c0_73, %c0_74] : memref<128x128xf32, #tpu.memory_space<vmem>>, vector<128x128xf32>
    %cst_75 = arith.constant dense<0.000000e+00> : vector<8x128xf32>
    %266 = tpu.matmul %264, %265, %cst_75 {dimension_numbers = #tpu.dot_dimension_numbers<[1], [0], [0], [1], [0, 0, 1, 1], [], []>} : vector<8x128xf32>, vector<128x128xf32>, vector<8x128xf32> -> vector<8x128xf32>
    %c0_76 = arith.constant 0 : index
    %c0_77 = arith.constant 0 : index
    %267 = vector.load %arg6[%c0_76, %c0_77] : memref<1x128xf32, #tpu.memory_space<vmem>>, vector<1x128xf32>
    %268 = vector.broadcast %267 : vector<1x128xf32> to vector<8x128xf32>
    %269 = arith.addf %266, %268 : vector<8x128xf32>
    %270 = arith.negf %269 : vector<8x128xf32>
    %271 = math.exp %270 : vector<8x128xf32>
    %cst_78 = arith.constant 1.000000e+00 : f32
    %272 = vector.broadcast %cst_78 : f32 to vector<8x128xf32>
    %273 = arith.addf %272, %271 : vector<8x128xf32>
    %274 = arith.divf %272, %273 : vector<8x128xf32>
    %c0_79 = arith.constant 0 : index
    %c0_80 = arith.constant 0 : index
    %275 = vector.load %arg7[%c0_79, %c0_80] : memref<8x128xf32, #tpu.memory_space<vmem>>, vector<8x128xf32>
    tpu.vector_store %arg7[%c0_79, %c0_80], %274 {strides = array<i32>} : memref<8x128xf32, #tpu.memory_space<vmem>>, vector<8x128xf32>,
    return
  }
  func.func @transform_0(%arg0: i32) -> (i32, i32) {
    %c0_i32 = arith.constant 0 : i32
    %c0_i32_0 = arith.constant 0 : i32
    %c0_i32_1 = arith.constant 0 : i32
    return %c0_i32, %c0_i32_0 : i32, i32
  }
  func.func @transform_1(%arg0: i32) -> (i32, i32) {
    %c0_i32 = arith.constant 0 : i32
    %c0_i32_0 = arith.constant 0 : i32
    %c0_i32_1 = arith.constant 0 : i32
    return %c0_i32, %c0_i32_0 : i32, i32
  }
  func.func @transform_2(%arg0: i32) -> (i32, i32) {
    %c0_i32 = arith.constant 0 : i32
    %c0_i32_0 = arith.constant 0 : i32
    %c0_i32_1 = arith.constant 0 : i32
    return %c0_i32, %c0_i32_0 : i32, i32
  }
  func.func @transform_3(%arg0: i32) -> (i32, i32) {
    %c0_i32 = arith.constant 0 : i32
    %c0_i32_0 = arith.constant 0 : i32
    %c0_i32_1 = arith.constant 0 : i32
    return %c0_i32, %c0_i32_0 : i32, i32
  }
  func.func @transform_4(%arg0: i32) -> (i32, i32) {
    %c0_i32 = arith.constant 0 : i32
    %c0_i32_0 = arith.constant 0 : i32
    %c0_i32_1 = arith.constant 0 : i32
    return %c0_i32, %c0_i32_0 : i32, i32
  }
  func.func @transform_5(%arg0: i32) -> (i32, i32) {
    %c0_i32 = arith.constant 0 : i32
    %c0_i32_0 = arith.constant 0 : i32
    %c0_i32_1 = arith.constant 0 : i32
    return %c0_i32, %c0_i32_0 : i32, i32
  }
  func.func @transform_6(%arg0: i32) -> (i32, i32) {
    %c0_i32 = arith.constant 0 : i32
    %c0_i32_0 = arith.constant 0 : i32
    %c0_i32_1 = arith.constant 0 : i32
    return %c0_i32, %c0_i32_0 : i32, i32
  }
}

</mosaic_0001>

<llo_original>
// kernel: tpu_custom_call.1
$region0: #{tpu_custom_call.1}
  #allocation0 [shape = 'u32[]', space=smem, size = 0x4, offset = 0x4, fixed_abs, tag = 'smem constant byte address 0x4 - core index']
  #allocation1 [shape = 'u32[72,128]{1,0:T(1,128)}', space=vmem, size = 0x9000, scoped, tag = 'internal scratch']
  #allocation2 [shape = 'f32[64,512]{1,0:T(8,128)}', space=vmem, size = 0x20000, scoped, tag = 'scratch operand']
  %s0 = inlined_call_operand.vmem [shape: f32[64,8], index: 0, kind: input, shape index: {}]
  %s1 = inlined_call_operand.vmem [shape: f32[8,512], index: 1, kind: input, shape index: {}]
  %s2 = inlined_call_operand.hbm [shape: f32[128,512], index: 2, kind: input, shape index: {}]
  %s3 = inlined_call_operand.vmem [shape: f32[1,512], index: 3, kind: input, shape index: {}]
  %s4 = inlined_call_operand.hbm [shape: f32[128,128], index: 4, kind: input, shape index: {}]
  %s5 = inlined_call_operand.vmem [shape: f32[1,128], index: 5, kind: input, shape index: {}]
  %s6 = inlined_call_operand.hbm [shape: f32[8,128], index: 6, kind: output, shape index: {}]
  %s7 = sld [smem:[#allocation0]]
  $region42: #{tpu_custom_call.1} parent=0
    _
  %s9 = ssub.s32 1, %s7
  %s10 = scalar_select 0, %s9, %s7
  $region1: #{tpu_custom_call.1} parent=0
    #allocation3 [shape = 'u8[262144]{0}', space=vmem, size = 0x40000, scoped, tag = 'input window, operand 2, single buffered']
    #allocation4 [shape = 's32[1]{0}', space=sflag, size = 0x4, scoped, tag = 'scoped memory for tpu_custom_call.1']
    #allocation5 [shape = 's32[1]{0}', space=sflag, size = 0x4, scoped, tag = 'scoped memory for tpu_custom_call.1']
    #allocation6 [shape = 'u8[65536]{0}', space=vmem, size = 0x10000, scoped, tag = 'input window, operand 4, single buffered']
    #allocation7 [shape = 's32[1]{0}', space=sflag, size = 0x4, scoped, tag = 'scoped memory for tpu_custom_call.1']
    #allocation8 [shape = 'u8[4096]{0}', space=vmem, size = 0x1000, scoped, tag = 'output window, operand 0, single buffered']
    %11 = vsyncpa [#allocation4], 0
    %12 = vsyncpa [#allocation7], 0
    %13 = vsyncpa [#allocation5], 0
    // Predicated region
    $region2: #{tpu_custom_call.1} parent=1 // pred_check
      _
    $region3: #{tpu_custom_call.1} parent=1 // pred_check_branch
      %15 = sbr.rel (0) target = $region5
    $region4: #{tpu_custom_call.1} parent=1 // pred_region
      _
    $region5: #{tpu_custom_call.1} parent=1 // pred_fallthru
      _
    // Predicated region
    $region6: #{tpu_custom_call.1} parent=1 // pred_check
      _
    $region7: #{tpu_custom_call.1} parent=1 // pred_check_branch
      %17 = sbr.rel (0) target = $region9
    $region8: #{tpu_custom_call.1} parent=1 // pred_region
      _
    $region9: #{tpu_custom_call.1} parent=1 // pred_fallthru
      _
    // Predicated region
    $region10: #{tpu_custom_call.1} parent=1 // pred_check
      _
    $region11: #{tpu_custom_call.1} parent=1 // pred_check_branch
      %19 = sbr.rel (0) target = $region13
    $region12: #{tpu_custom_call.1} parent=1 // pred_region
      %21 = vsyncadd [#allocation4], 0
      %s22 = sshll.u32 %s2, 4
      %s23 = int_to_ptr.hbm [resolvable:$true] %s22
      %s24 = sshll.u32 [#allocation3], 4
      %s25 = int_to_ptr.vmem [resolvable:$true] %s24
      %30 = dma.hbm_to_vmem [thread:$0]  %s23, 8192, %s25, [#allocation4], 512, 512, 32
    $region13: #{tpu_custom_call.1} parent=1 // pred_fallthru
      _
    // Predicated region
    $region14: #{tpu_custom_call.1} parent=1 // pred_check
      _
    $region15: #{tpu_custom_call.1} parent=1 // pred_check_branch
      %32 = sbr.rel (0) target = $region17
    $region16: #{tpu_custom_call.1} parent=1 // pred_region
      _
    $region17: #{tpu_custom_call.1} parent=1 // pred_fallthru
      _
    // Predicated region
    $region18: #{tpu_custom_call.1} parent=1 // pred_check
      _
    $region19: #{tpu_custom_call.1} parent=1 // pred_check_branch
      %34 = sbr.rel (0) target = $region21
    $region20: #{tpu_custom_call.1} parent=1 // pred_region
      %36 = vsyncadd [#allocation7], 0
      %s37 = sshll.u32 %s4, 4
      %s38 = int_to_ptr.hbm [resolvable:$true] %s37
      %s39 = sshll.u32 [#allocation6], 4
      %s40 = int_to_ptr.vmem [resolvable:$true] %s39
      %45 = dma.hbm_to_vmem [thread:$0]  %s38, 2048, %s40, [#allocation7], 128, 128, 8
    $region21: #{tpu_custom_call.1} parent=1 // pred_fallthru
      _
    // Predicated region
    $region22: #{tpu_custom_call.1} parent=1 // pred_check
      _
    $region23: #{tpu_custom_call.1} parent=1 // pred_check_branch
      %47 = sbr.rel (0) target = $region25
    $region24: #{tpu_custom_call.1} parent=1 // pred_region
      _
    $region25: #{tpu_custom_call.1} parent=1 // pred_fallthru
      _
    // Predicated region
    $region26: #{tpu_custom_call.1} parent=1 // pred_check
      _
    $region27: #{tpu_custom_call.1} parent=1 // pred_check_branch
      %49 = sbr.rel (0) target = $region29
    $region28: #{tpu_custom_call.1} parent=1 // pred_region
      %51 = dma.done [#allocation4], 8192
    $region29: #{tpu_custom_call.1} parent=1 // pred_fallthru
      _
    // Predicated region
    $region30: #{tpu_custom_call.1} parent=1 // pred_check
      _
    $region31: #{tpu_custom_call.1} parent=1 // pred_check_branch
      %53 = sbr.rel (0) target = $region33
    $region32: #{tpu_custom_call.1} parent=1 // pred_region
      %55 = dma.done [#allocation7], 2048
    $region33: #{tpu_custom_call.1} parent=1 // pred_fallthru
      _
    %v56 = vld [vmem:[%s0] sm:$0xff]
    %v57 = vld [vmem:[%s0 + $0x8] sm:$0xff]
    %v58 = vld [vmem:[%s0 + $0x10] sm:$0xff]
    %v59 = vld [vmem:[%s0 + $0x18] sm:$0xff]
    %v60 = vld [vmem:[%s0 + $0x20] sm:$0xff]
    %v61 = vld [vmem:[%s0 + $0x28] sm:$0xff]
    %v62 = vld [vmem:[%s0 + $0x30] sm:$0xff]
    %v63 = vld [vmem:[%s0 + $0x38] sm:$0xff]
    %v64 = vld [vmem:[%s1] sm:$0xff]
    %v65 = vld [vmem:[%s1 + $0x8] sm:$0xff]
    %v66 = vld [vmem:[%s1 + $0x10] sm:$0xff]
    %v67 = vld [vmem:[%s1 + $0x18] sm:$0xff]
    %v68 = vld [vmem:[%s3] sm:$0xf]
    %v70 = vperm.slane %v68, 0
    %v71 = vperm.slane %v68, 1
    %v72 = vperm.slane %v68, 2
    %v73 = vperm.slane %v68, 3
    %vm78 = vcmask 64512
    %v80 = vsel %vm78, %v56, 0
    %v83 = vsel %vm78, %v57, 0
    %v86 = vsel %vm78, %v58, 0
    %v89 = vsel %vm78, %v59, 0
    %v92 = vsel %vm78, %v60, 0
    %v95 = vsel %vm78, %v61, 0
    %v98 = vsel %vm78, %v62, 0
    %v101 = vsel %vm78, %v63, 0
    %103 = vmatpush.msra.mxu0 0.0
    %104 = vmatpush.msra.mxu0 0.0
    %105 = vmatpush.msra.mxu0 0.0
    %106 = vmatpush.msra.mxu0 0.0
    %107 = vmatpush.msra.mxu0 0.0
    %108 = vmatpush.msra.mxu0 0.0
    %109 = vmatpush.msra.mxu0 0.0
    %110 = vmatpush.msra.mxu0 0.0
    %111 = vmatpush.msra.mxu0 0.0
    %112 = vmatpush.msra.mxu0 0.0
    %113 = vmatpush.msra.mxu0 0.0
    %114 = vmatpush.msra.mxu0 0.0
    %115 = vmatpush.msra.mxu0 0.0
    %116 = vmatpush.msra.mxu0 0.0
    %117 = vmatpush.msra.mxu0 0.0
    %118 = vmatpush.msra.mxu0 %v64
    %119 = vmatmul.f32.gmra.mxu0 %v80
    %v120 = vpop.f32.mrf.mxu0
    %v121 = vadd.f32 %v70, %v120
    %122 = vmatmul.f32.gmra.mxu0 %v83
    %v123 = vpop.f32.mrf.mxu0
    %v124 = vadd.f32 %v70, %v123
    %125 = vmatmul.f32.gmra.mxu0 %v86
    %v126 = vpop.f32.mrf.mxu0
    %v127 = vadd.f32 %v70, %v126
    %128 = vmatmul.f32.gmra.mxu0 %v89
    %v129 = vpop.f32.mrf.mxu0
    %v130 = vadd.f32 %v70, %v129
    %131 = vmatmul.f32.gmra.mxu0 %v92
    %v132 = vpop.f32.mrf.mxu0
    %v133 = vadd.f32 %v70, %v132
    %134 = vmatmul.f32.gmra.mxu0 %v95
    %v135 = vpop.f32.mrf.mxu0
    %v136 = vadd.f32 %v70, %v135
    %137 = vmatmul.f32.gmra.mxu0 %v98
    %v138 = vpop.f32.mrf.mxu0
    %v139 = vadd.f32 %v70, %v138
    %140 = vmatmul.f32.gmra.mxu0 %v101
    %v141 = vpop.f32.mrf.mxu0
    %v142 = vadd.f32 %v70, %v141
    %143 = vdwg.mxu0
    %144 = vmatpush.msra.mxu0 0.0
    %145 = vmatpush.msra.mxu0 0.0
    %146 = vmatpush.msra.mxu0 0.0
    %147 = vmatpush.msra.mxu0 0.0
    %148 = vmatpush.msra.mxu0 0.0
    %149 = vmatpush.msra.mxu0 0.0
    %150 = vmatpush.msra.mxu0 0.0
    %151 = vmatpush.msra.mxu0 0.0
    %152 = vmatpush.msra.mxu0 0.0
    %153 = vmatpush.msra.mxu0 0.0
    %154 = vmatpush.msra.mxu0 0.0
    %155 = vmatpush.msra.mxu0 0.0
    %156 = vmatpush.msra.mxu0 0.0
    %157 = vmatpush.msra.mxu0 0.0
    %158 = vmatpush.msra.mxu0 0.0
    %159 = vmatpush.msra.mxu0 %v65
    %160 = vmatmul.f32.gmra.mxu0 %v80
    %v161 = vpop.f32.mrf.mxu0
    %v162 = vadd.f32 %v71, %v161
    %163 = vmatmul.f32.gmra.mxu0 %v83
    %v164 = vpop.f32.mrf.mxu0
    %v165 = vadd.f32 %v71, %v164
    %166 = vmatmul.f32.gmra.mxu0 %v86
    %v167 = vpop.f32.mrf.mxu0
    %v168 = vadd.f32 %v71, %v167
    %169 = vmatmul.f32.gmra.mxu0 %v89
    %v170 = vpop.f32.mrf.mxu0
    %v171 = vadd.f32 %v71, %v170
    %172 = vmatmul.f32.gmra.mxu0 %v92
    %v173 = vpop.f32.mrf.mxu0
    %v174 = vadd.f32 %v71, %v173
    %175 = vmatmul.f32.gmra.mxu0 %v95
    %v176 = vpop.f32.mrf.mxu0
    %v177 = vadd.f32 %v71, %v176
    %178 = vmatmul.f32.gmra.mxu0 %v98
    %v179 = vpop.f32.mrf.mxu0
    %v180 = vadd.f32 %v71, %v179
    %181 = vmatmul.f32.gmra.mxu0 %v101
    %v182 = vpop.f32.mrf.mxu0
    %v183 = vadd.f32 %v71, %v182
    %184 = vdwg.mxu0
    %185 = vmatpush.msra.mxu0 0.0
    %186 = vmatpush.msra.mxu0 0.0
    %187 = vmatpush.msra.mxu0 0.0
    %188 = vmatpush.msra.mxu0 0.0
    %189 = vmatpush.msra.mxu0 0.0
    %190 = vmatpush.msra.mxu0 0.0
    %191 = vmatpush.msra.mxu0 0.0
    %192 = vmatpush.msra.mxu0 0.0
    %193 = vmatpush.msra.mxu0 0.0
    %194 = vmatpush.msra.mxu0 0.0
    %195 = vmatpush.msra.mxu0 0.0
    %196 = vmatpush.msra.mxu0 0.0
    %197 = vmatpush.msra.mxu0 0.0
    %198 = vmatpush.msra.mxu0 0.0
    %199 = vmatpush.msra.mxu0 0.0
    %200 = vmatpush.msra.mxu0 %v66
    %201 = vmatmul.f32.gmra.mxu0 %v80
    %v202 = vpop.f32.mrf.mxu0
    %v203 = vadd.f32 %v72, %v202
    %204 = vmatmul.f32.gmra.mxu0 %v83
    %v205 = vpop.f32.mrf.mxu0
    %v206 = vadd.f32 %v72, %v205
    %207 = vmatmul.f32.gmra.mxu0 %v86
    %v208 = vpop.f32.mrf.mxu0
    %v209 = vadd.f32 %v72, %v208
    %210 = vmatmul.f32.gmra.mxu0 %v89
    %v211 = vpop.f32.mrf.mxu0
    %v212 = vadd.f32 %v72, %v211
    %213 = vmatmul.f32.gmra.mxu0 %v92
    %v214 = vpop.f32.mrf.mxu0
    %v215 = vadd.f32 %v72, %v214
    %216 = vmatmul.f32.gmra.mxu0 %v95
    %v217 = vpop.f32.mrf.mxu0
    %v218 = vadd.f32 %v72, %v217
    %219 = vmatmul.f32.gmra.mxu0 %v98
    %v220 = vpop.f32.mrf.mxu0
    %v221 = vadd.f32 %v72, %v220
    %222 = vmatmul.f32.gmra.mxu0 %v101
    %v223 = vpop.f32.mrf.mxu0
    %v224 = vadd.f32 %v72, %v223
    %225 = vdwg.mxu0
    %226 = vmatpush.msra.mxu0 0.0
    %227 = vmatpush.msra.mxu0 0.0
    %228 = vmatpush.msra.mxu0 0.0
    %229 = vmatpush.msra.mxu0 0.0
    %230 = vmatpush.msra.mxu0 0.0
    %231 = vmatpush.msra.mxu0 0.0
    %232 = vmatpush.msra.mxu0 0.0
    %233 = vmatpush.msra.mxu0 0.0
    %234 = vmatpush.msra.mxu0 0.0
    %235 = vmatpush.msra.mxu0 0.0
    %236 = vmatpush.msra.mxu0 0.0
    %237 = vmatpush.msra.mxu0 0.0
    %238 = vmatpush.msra.mxu0 0.0
    %239 = vmatpush.msra.mxu0 0.0
    %240 = vmatpush.msra.mxu0 0.0
    %241 = vmatpush.msra.mxu0 %v67
    %242 = vmatmul.f32.gmra.mxu0 %v80
    %v243 = vpop.f32.mrf.mxu0
    %v244 = vadd.f32 %v73, %v243
    %245 = vmatmul.f32.gmra.mxu0 %v83
    %v246 = vpop.f32.mrf.mxu0
    %v247 = vadd.f32 %v73, %v246
    %248 = vmatmul.f32.gmra.mxu0 %v86
    %v249 = vpop.f32.mrf.mxu0
    %v250 = vadd.f32 %v73, %v249
    %251 = vmatmul.f32.gmra.mxu0 %v89
    %v252 = vpop.f32.mrf.mxu0
    %v253 = vadd.f32 %v73, %v252
    %254 = vmatmul.f32.gmra.mxu0 %v92
    %v255 = vpop.f32.mrf.mxu0
    %v256 = vadd.f32 %v73, %v255
    %257 = vmatmul.f32.gmra.mxu0 %v95
    %v258 = vpop.f32.mrf.mxu0
    %v259 = vadd.f32 %v73, %v258
    %260 = vmatmul.f32.gmra.mxu0 %v98
    %v261 = vpop.f32.mrf.mxu0
    %v262 = vadd.f32 %v73, %v261
    %263 = vmatmul.f32.gmra.mxu0 %v101
    %v264 = vpop.f32.mrf.mxu0
    %v265 = vadd.f32 %v73, %v264
    %266 = vdwg.mxu0
    %267 = vst [vmem:[#allocation2] sm:$0xff] %v121
    %268 = vst [vmem:[#allocation2 + $0x8] sm:$0xff] %v162
    %269 = vst [vmem:[#allocation2 + $0x10] sm:$0xff] %v203
    %270 = vst [vmem:[#allocation2 + $0x18] sm:$0xff] %v244
    %271 = vst [vmem:[#allocation2 + $0x20] sm:$0xff] %v124
    %272 = vst [vmem:[#allocation2 + $0x28] sm:$0xff] %v165
    %273 = vst [vmem:[#allocation2 + $0x30] sm:$0xff] %v206
    %274 = vst [vmem:[#allocation2 + $0x38] sm:$0xff] %v247
    %275 = vst [vmem:[#allocation2 + $0x40] sm:$0xff] %v127
    %276 = vst [vmem:[#allocation2 + $0x48] sm:$0xff] %v168
    %277 = vst [vmem:[#allocation2 + $0x50] sm:$0xff] %v209
    %278 = vst [vmem:[#allocation2 + $0x58] sm:$0xff] %v250
    %279 = vst [vmem:[#allocation2 + $0x60] sm:$0xff] %v130
    %280 = vst [vmem:[#allocation2 + $0x68] sm:$0xff] %v171
    %281 = vst [vmem:[#allocation2 + $0x70] sm:$0xff] %v212
    %282 = vst [vmem:[#allocation2 + $0x78] sm:$0xff] %v253
    %283 = vst [vmem:[#allocation2 + $0x80] sm:$0xff] %v133
    %284 = vst [vmem:[#allocation2 + $0x88] sm:$0xff] %v174
    %285 = vst [vmem:[#allocation2 + $0x90] sm:$0xff] %v215
    %286 = vst [vmem:[#allocation2 + $0x98] sm:$0xff] %v256
    %287 = vst [vmem:[#allocation2 + $0xa0] sm:$0xff] %v136
    %288 = vst [vmem:[#allocation2 + $0xa8] sm:$0xff] %v177
    %289 = vst [vmem:[#allocation2 + $0xb0] sm:$0xff] %v218
    %290 = vst [vmem:[#allocation2 + $0xb8] sm:$0xff] %v259
    %291 = vst [vmem:[#allocation2 + $0xc0] sm:$0xff] %v139
    %292 = vst [vmem:[#allocation2 + $0xc8] sm:$0xff] %v180
    %293 = vst [vmem:[#allocation2 + $0xd0] sm:$0xff] %v221
    %294 = vst [vmem:[#allocation2 + $0xd8] sm:$0xff] %v262
    %295 = vst [vmem:[#allocation2 + $0xe0] sm:$0xff] %v142
    %296 = vst [vmem:[#allocation2 + $0xe8] sm:$0xff] %v183
    %297 = vst [vmem:[#allocation2 + $0xf0] sm:$0xff] %v224
    %298 = vst [vmem:[#allocation2 + $0xf8] sm:$0xff] %v265
    %s299 = smul.u32 0, 4
    %s300 = smul.addr %s299, 8
    %s301 = scalar_lea.vmem [#allocation2], %s300
    %v302 = vld [vmem:[%s301] sm:$0xff]
    %v303 = vld [vmem:[%s301 + $0x8] sm:$0xff]
    %v304 = vld [vmem:[%s301 + $0x10] sm:$0xff]
    %v305 = vld [vmem:[%s301 + $0x18] sm:$0xff]
    %v306 = vld [vmem:[#allocation3] sm:$0xff]
    %v307 = vld [vmem:[#allocation3 + $0x8] sm:$0xff]
    %v308 = vld [vmem:[#allocation3 + $0x10] sm:$0xff]
    %v309 = vld [vmem:[#allocation3 + $0x18] sm:$0xff]
    %v310 = vld [vmem:[#allocation3 + $0x20] sm:$0xff]
    %v311 = vld [vmem:[#allocation3 + $0x28] sm:$0xff]
    %v312 = vld [vmem:[#allocation3 + $0x30] sm:$0xff]
    %v313 = vld [vmem:[#allocation3 + $0x38] sm:$0xff]
    %v314 = vld [vmem:[#allocation3 + $0x40] sm:$0xff]
    %v315 = vld [vmem:[#allocation3 + $0x48] sm:$0xff]
    %v316 = vld [vmem:[#allocation3 + $0x50] sm:$0xff]
    %v317 = vld [vmem:[#allocation3 + $0x58] sm:$0xff]
    %v318 = vld [vmem:[#allocation3 + $0x60] sm:$0xff]
    %v319 = vld [vmem:[#allocation3 + $0x68] sm:$0xff]
    %v320 = vld [vmem:[#allocation3 + $0x70] sm:$0xff]
    %v321 = vld [vmem:[#allocation3 + $0x78] sm:$0xff]
    %v322 = vld [vmem:[#allocation3 + $0x80] sm:$0xff]
    %v323 = vld [vmem:[#allocation3 + $0x88] sm:$0xff]
    %v324 = vld [vmem:[#allocation3 + $0x90] sm:$0xff]
    %v325 = vld [vmem:[#allocation3 + $0x98] sm:$0xff]
    %v326 = vld [vmem:[#allocation3 + $0xa0] sm:$0xff]
    %v327 = vld [vmem:[#allocation3 + $0xa8] sm:$0xff]
    %v328 = vld [vmem:[#allocation3 + $0xb0] sm:$0xff]
    %v329 = vld [vmem:[#allocation3 + $0xb8] sm:$0xff]
    %v330 = vld [vmem:[#allocation3 + $0xc0] sm:$0xff]
    %v331 = vld [vmem:[#allocation3 + $0xc8] sm:$0xff]
    %v332 = vld [vmem:[#allocation3 + $0xd0] sm:$0xff]
    %v333 = vld [vmem:[#allocation3 + $0xd8] sm:$0xff]
    %v334 = vld [vmem:[#allocation3 + $0xe0] sm:$0xff]
    %v335 = vld [vmem:[#allocation3 + $0xe8] sm:$0xff]
    %v336 = vld [vmem:[#allocation3 + $0xf0] sm:$0xff]
    %v337 = vld [vmem:[#allocation3 + $0xf8] sm:$0xff]
    %v338 = vld [vmem:[#allocation3 + $0x100] sm:$0xff]
    %v339 = vld [vmem:[#allocation3 + $0x108] sm:$0xff]
    %v340 = vld [vmem:[#allocation3 + $0x110] sm:$0xff]
    %v341 = vld [vmem:[#allocation3 + $0x118] sm:$0xff]
    %v342 = vld [vmem:[#allocation3 + $0x120] sm:$0xff]
    %v343 = vld [vmem:[#allocation3 + $0x128] sm:$0xff]
    %v344 = vld [vmem:[#allocation3 + $0x130] sm:$0xff]
    %v345 = vld [vmem:[#allocation3 + $0x138] sm:$0xff]
    %v346 = vld [vmem:[#allocation3 + $0x140] sm:$0xff]
    %v347 = vld [vmem:[#allocation3 + $0x148] sm:$0xff]
    %v348 = vld [vmem:[#allocation3 + $0x150] sm:$0xff]
    %v349 = vld [vmem:[#allocation3 + $0x158] sm:$0xff]
    %v350 = vld [vmem:[#allocation3 + $0x160] sm:$0xff]
    %v351 = vld [vmem:[#allocation3 + $0x168] sm:$0xff]
    %v352 = vld [vmem:[#allocation3 + $0x170] sm:$0xff]
    %v353 = vld [vmem:[#allocation3 + $0x178] sm:$0xff]
    %v354 = vld [vmem:[#allocation3 + $0x180] sm:$0xff]
    %v355 = vld [vmem:[#allocation3 + $0x188] sm:$0xff]
    %v356 = vld [vmem:[#allocation3 + $0x190] sm:$0xff]
    %v357 = vld [vmem:[#allocation3 + $0x198] sm:$0xff]
    %v358 = vld [vmem:[#allocation3 + $0x1a0] sm:$0xff]
    %v359 = vld [vmem:[#allocation3 + $0x1a8] sm:$0xff]
    %v360 = vld [vmem:[#allocation3 + $0x1b0] sm:$0xff]
    %v361 = vld [vmem:[#allocation3 + $0x1b8] sm:$0xff]
    %v362 = vld [vmem:[#allocation3 + $0x1c0] sm:$0xff]
    %v363 = vld [vmem:[#allocation3 + $0x1c8] sm:$0xff]
    %v364 = vld [vmem:[#allocation3 + $0x1d0] sm:$0xff]
    %v365 = vld [vmem:[#allocation3 + $0x1d8] sm:$0xff]
    %v366 = vld [vmem:[#allocation3 + $0x1e0] sm:$0xff]
    %v367 = vld [vmem:[#allocation3 + $0x1e8] sm:$0xff]
    %v368 = vld [vmem:[#allocation3 + $0x1f0] sm:$0xff]
    %v369 = vld [vmem:[#allocation3 + $0x1f8] sm:$0xff]
    %370 = vmatpush.msra.mxu0 %v366
    %371 = vmatpush.msra.mxu0 %v362
    %372 = vmatpush.msra.mxu0 %v358
    %373 = vmatpush.msra.mxu0 %v354
    %374 = vmatpush.msra.mxu0 %v350
    %375 = vmatpush.msra.mxu0 %v346
    %376 = vmatpush.msra.mxu0 %v342
    %377 = vmatpush.msra.mxu0 %v338
    %378 = vmatpush.msra.mxu0 %v334
    %379 = vmatpush.msra.mxu0 %v330
    %380 = vmatpush.msra.mxu0 %v326
    %381 = vmatpush.msra.mxu0 %v322
    %382 = vmatpush.msra.mxu0 %v318
    %383 = vmatpush.msra.mxu0 %v314
    %384 = vmatpush.msra.mxu0 %v310
    %385 = vmatpush.msra.mxu0 %v306
    %386 = vmatmul.f32.gmra.mxu0 0.0
    %v387 = vpop.f32.mrf.mxu0
    %v388 = vadd.f32 0.0, %v387
    %389 = vdwg.mxu0
    %390 = vmatpush.msra.mxu0 %v367
    %391 = vmatpush.msra.mxu0 %v363
    %392 = vmatpush.msra.mxu0 %v359
    %393 = vmatpush.msra.mxu0 %v355
    %394 = vmatpush.msra.mxu0 %v351
    %395 = vmatpush.msra.mxu0 %v347
    %396 = vmatpush.msra.mxu0 %v343
    %397 = vmatpush.msra.mxu0 %v339
    %398 = vmatpush.msra.mxu0 %v335
    %399 = vmatpush.msra.mxu0 %v331
    %400 = vmatpush.msra.mxu0 %v327
    %401 = vmatpush.msra.mxu0 %v323
    %402 = vmatpush.msra.mxu0 %v319
    %403 = vmatpush.msra.mxu0 %v315
    %404 = vmatpush.msra.mxu0 %v311
    %405 = vmatpush.msra.mxu0 %v307
    %406 = vmatmul.f32.gmra.mxu0 0.0
    %v407 = vpop.f32.mrf.mxu0
    %v408 = vadd.f32 0.0, %v407
    %409 = vdwg.mxu0
    %410 = vmatpush.msra.mxu0 %v368
    %411 = vmatpush.msra.mxu0 %v364
    %412 = vmatpush.msra.mxu0 %v360
    %413 = vmatpush.msra.mxu0 %v356
    %414 = vmatpush.msra.mxu0 %v352
    %415 = vmatpush.msra.mxu0 %v348
    %416 = vmatpush.msra.mxu0 %v344
    %417 = vmatpush.msra.mxu0 %v340
    %418 = vmatpush.msra.mxu0 %v336
    %419 = vmatpush.msra.mxu0 %v332
    %420 = vmatpush.msra.mxu0 %v328
    %421 = vmatpush.msra.mxu0 %v324
    %422 = vmatpush.msra.mxu0 %v320
    %423 = vmatpush.msra.mxu0 %v316
    %424 = vmatpush.msra.mxu0 %v312
    %425 = vmatpush.msra.mxu0 %v308
    %426 = vmatmul.f32.gmra.mxu0 0.0
    %v427 = vpop.f32.mrf.mxu0
    %v428 = vadd.f32 0.0, %v427
    %429 = vdwg.mxu0
    %430 = vmatpush.msra.mxu0 %v369
    %431 = vmatpush.msra.mxu0 %v365
    %432 = vmatpush.msra.mxu0 %v361
    %433 = vmatpush.msra.mxu0 %v357
    %434 = vmatpush.msra.mxu0 %v353
    %435 = vmatpush.msra.mxu0 %v349
    %436 = vmatpush.msra.mxu0 %v345
    %437 = vmatpush.msra.mxu0 %v341
    %438 = vmatpush.msra.mxu0 %v337
    %439 = vmatpush.msra.mxu0 %v333
    %440 = vmatpush.msra.mxu0 %v329
    %441 = vmatpush.msra.mxu0 %v325
    %442 = vmatpush.msra.mxu0 %v321
    %443 = vmatpush.msra.mxu0 %v317
    %444 = vmatpush.msra.mxu0 %v313
    %445 = vmatpush.msra.mxu0 %v309
    %446 = vmatmul.f32.gmra.mxu0 0.0
    %v447 = vpop.f32.mrf.mxu0
    %v448 = vadd.f32 0.0, %v447
    %449 = vdwg.mxu0
    %v450 = vadd.f32 %v302, %v388
    %v451 = vadd.f32 %v303, %v408
    %v452 = vadd.f32 %v304, %v428
    %v453 = vadd.f32 %v305, %v448
    %v454 = vxor.u32 %v450, 2147483648
    %v455 = vmul.f32 %v454, 1.442695
    %v456 = vpow.pop %v455
    %v457 = vadd.f32 %v456, 1.0
    %v458 = vrcp.pop %v457
    %v459 = vmul.f32 %v457, %v458
    %v460 = vsub.f32 1.0, %v459
    %v461 = vmul.f32 %v458, %v460
    %v462 = vadd.f32 %v458, %v461
    %vm463 = vweird.f32 %v457
    %vm464 = vweird.f32 %v458
    %vm465 = vmor %vm463, %vm464
    %v466 = vsel %vm465, %v458, %v462
    %v467 = vand.u32 2147483647, %v457
    %vm468 = vcmp.eq.f32.partialorder %v467, 8.507059e+37
    %v469 = vand.u32 %v457, 2147483648
    %v470 = vor.u32 1.1754944e-38, %v469
    %v471 = vsel %vm468, %v470, %v466
    %v472 = vmul.f32 1.0, %v471
    %v473 = vxor.u32 %v451, 2147483648
    %v474 = vmul.f32 %v473, 1.442695
    %v475 = vpow.pop %v474
    %v476 = vadd.f32 %v475, 1.0
    %v477 = vrcp.pop %v476
    %v478 = vmul.f32 %v476, %v477
    %v479 = vsub.f32 1.0, %v478
    %v480 = vmul.f32 %v477, %v479
    %v481 = vadd.f32 %v477, %v480
    %vm482 = vweird.f32 %v476
    %vm483 = vweird.f32 %v477
    %vm484 = vmor %vm482, %vm483
    %v485 = vsel %vm484, %v477, %v481
    %v486 = vand.u32 2147483647, %v476
    %vm487 = vcmp.eq.f32.partialorder %v486, 8.507059e+37
    %v488 = vand.u32 %v476, 2147483648
    %v489 = vor.u32 1.1754944e-38, %v488
    %v490 = vsel %vm487, %v489, %v485
    %v491 = vmul.f32 1.0, %v490
    %v492 = vtanh.pop %v452
    %v493 = vxor.u32 %v453, 2147483648
    %v494 = vmul.f32 %v493, 1.442695
    %v495 = vpow.pop %v494
    %v496 = vadd.f32 %v495, 1.0
    %v497 = vrcp.pop %v496
    %v498 = vmul.f32 %v496, %v497
    %v499 = vsub.f32 1.0, %v498
    %v500 = vmul.f32 %v497, %v499
    %v501 = vadd.f32 %v497, %v500
    %vm502 = vweird.f32 %v496
    %vm503 = vweird.f32 %v497
    %vm504 = vmor %vm502, %vm503
    %v505 = vsel %vm504, %v497, %v501
    %v506 = vand.u32 2147483647, %v496
    %vm507 = vcmp.eq.f32.partialorder %v506, 8.507059e+37
    %v508 = vand.u32 %v496, 2147483648
    %v509 = vor.u32 1.1754944e-38, %v508
    %v510 = vsel %vm507, %v509, %v505
    %v511 = vmul.f32 1.0, %v510
    %v512 = vmul.f32 %v491, 0.0
    %v513 = vmul.f32 %v472, %v492
    %v514 = vadd.f32 %v512, %v513
    %v515 = vtanh.pop %v514
    %v516 = vmul.f32 %v511, %v515
    %s517 = smul.u32 1, 4
    %s518 = smul.addr %s517, 8
    %s519 = scalar_lea.vmem [#allocation2], %s518
    %v520 = vld [vmem:[%s519] sm:$0xff]
    %v521 = vld [vmem:[%s519 + $0x8] sm:$0xff]
    %v522 = vld [vmem:[%s519 + $0x10] sm:$0xff]
    %v523 = vld [vmem:[%s519 + $0x18] sm:$0xff]
    %524 = vmatpush.msra.mxu0 %v366
    %525 = vmatpush.msra.mxu0 %v362
    %526 = vmatpush.msra.mxu0 %v358
    %527 = vmatpush.msra.mxu0 %v354
    %528 = vmatpush.msra.mxu0 %v350
    %529 = vmatpush.msra.mxu0 %v346
    %530 = vmatpush.msra.mxu0 %v342
    %531 = vmatpush.msra.mxu0 %v338
    %532 = vmatpush.msra.mxu0 %v334
    %533 = vmatpush.msra.mxu0 %v330
    %534 = vmatpush.msra.mxu0 %v326
    %535 = vmatpush.msra.mxu0 %v322
    %536 = vmatpush.msra.mxu0 %v318
    %537 = vmatpush.msra.mxu0 %v314
    %538 = vmatpush.msra.mxu0 %v310
    %539 = vmatpush.msra.mxu0 %v306
    %540 = vmatmul.f32.gmra.mxu0 %v516
    %v541 = vpop.f32.mrf.mxu0
    %v542 = vadd.f32 0.0, %v541
    %543 = vdwg.mxu0
    %544 = vmatpush.msra.mxu0 %v367
    %545 = vmatpush.msra.mxu0 %v363
    %546 = vmatpush.msra.mxu0 %v359
    %547 = vmatpush.msra.mxu0 %v355
    %548 = vmatpush.msra.mxu0 %v351
    %549 = vmatpush.msra.mxu0 %v347
    %550 = vmatpush.msra.mxu0 %v343
    %551 = vmatpush.msra.mxu0 %v339
    %552 = vmatpush.msra.mxu0 %v335
    %553 = vmatpush.msra.mxu0 %v331
    %554 = vmatpush.msra.mxu0 %v327
    %555 = vmatpush.msra.mxu0 %v323
    %556 = vmatpush.msra.mxu0 %v319
    %557 = vmatpush.msra.mxu0 %v315
    %558 = vmatpush.msra.mxu0 %v311
    %559 = vmatpush.msra.mxu0 %v307
    %560 = vmatmul.f32.gmra.mxu0 %v516
    %v561 = vpop.f32.mrf.mxu0
    %v562 = vadd.f32 0.0, %v561
    %563 = vdwg.mxu0
    %564 = vmatpush.msra.mxu0 %v368
    %565 = vmatpush.msra.mxu0 %v364
    %566 = vmatpush.msra.mxu0 %v360
    %567 = vmatpush.msra.mxu0 %v356
    %568 = vmatpush.msra.mxu0 %v352
    %569 = vmatpush.msra.mxu0 %v348
    %570 = vmatpush.msra.mxu0 %v344
    %571 = vmatpush.msra.mxu0 %v340
    %572 = vmatpush.msra.mxu0 %v336
    %573 = vmatpush.msra.mxu0 %v332
    %574 = vmatpush.msra.mxu0 %v328
    %575 = vmatpush.msra.mxu0 %v324
    %576 = vmatpush.msra.mxu0 %v320
    %577 = vmatpush.msra.mxu0 %v316
    %578 = vmatpush.msra.mxu0 %v312
    %579 = vmatpush.msra.mxu0 %v308
    %580 = vmatmul.f32.gmra.mxu0 %v516
    %v581 = vpop.f32.mrf.mxu0
    %v582 = vadd.f32 0.0, %v581
    %583 = vdwg.mxu0
    %584 = vmatpush.msra.mxu0 %v369
    %585 = vmatpush.msra.mxu0 %v365
    %586 = vmatpush.msra.mxu0 %v361
    %587 = vmatpush.msra.mxu0 %v357
    %588 = vmatpush.msra.mxu0 %v353
    %589 = vmatpush.msra.mxu0 %v349
    %590 = vmatpush.msra.mxu0 %v345
    %591 = vmatpush.msra.mxu0 %v341
    %592 = vmatpush.msra.mxu0 %v337
    %593 = vmatpush.msra.mxu0 %v333
    %594 = vmatpush.msra.mxu0 %v329
    %595 = vmatpush.msra.mxu0 %v325
    %596 = vmatpush.msra.mxu0 %v321
    %597 = vmatpush.msra.mxu0 %v317
    %598 = vmatpush.msra.mxu0 %v313
    %599 = vmatpush.msra.mxu0 %v309
    %600 = vmatmul.f32.gmra.mxu0 %v516
    %v601 = vpop.f32.mrf.mxu0
    %v602 = vadd.f32 0.0, %v601
    %603 = vdwg.mxu0
    %v604 = vadd.f32 %v520, %v542
    %v605 = vadd.f32 %v521, %v562
    %v606 = vadd.f32 %v522, %v582
    %v607 = vadd.f32 %v523, %v602
    %v608 = vxor.u32 %v604, 2147483648
    %v609 = vmul.f32 %v608, 1.442695
    %v610 = vpow.pop %v609
    %v611 = vadd.f32 %v610, 1.0
    %v612 = vrcp.pop %v611
    %v613 = vmul.f32 %v611, %v612
    %v614 = vsub.f32 1.0, %v613
    %v615 = vmul.f32 %v612, %v614
    %v616 = vadd.f32 %v612, %v615
    %vm617 = vweird.f32 %v611
    %vm618 = vweird.f32 %v612
    %vm619 = vmor %vm617, %vm618
    %v620 = vsel %vm619, %v612, %v616
    %v621 = vand.u32 2147483647, %v611
    %vm622 = vcmp.eq.f32.partialorder %v621, 8.507059e+37
    %v623 = vand.u32 %v611, 2147483648
    %v624 = vor.u32 1.1754944e-38, %v623
    %v625 = vsel %vm622, %v624, %v620
    %v626 = vmul.f32 1.0, %v625
    %v627 = vxor.u32 %v605, 2147483648
    %v628 = vmul.f32 %v627, 1.442695
    %v629 = vpow.pop %v628
    %v630 = vadd.f32 %v629, 1.0
    %v631 = vrcp.pop %v630
    %v632 = vmul.f32 %v630, %v631
    %v633 = vsub.f32 1.0, %v632
    %v634 = vmul.f32 %v631, %v633
    %v635 = vadd.f32 %v631, %v634
    %vm636 = vweird.f32 %v630
    %vm637 = vweird.f32 %v631
    %vm638 = vmor %vm636, %vm637
    %v639 = vsel %vm638, %v631, %v635
    %v640 = vand.u32 2147483647, %v630
    %vm641 = vcmp.eq.f32.partialorder %v640, 8.507059e+37
    %v642 = vand.u32 %v630, 2147483648
    %v643 = vor.u32 1.1754944e-38, %v642
    %v644 = vsel %vm641, %v643, %v639
    %v645 = vmul.f32 1.0, %v644
    %v646 = vtanh.pop %v606
    %v647 = vxor.u32 %v607, 2147483648
    %v648 = vmul.f32 %v647, 1.442695
    %v649 = vpow.pop %v648
    %v650 = vadd.f32 %v649, 1.0
    %v651 = vrcp.pop %v650
    %v652 = vmul.f32 %v650, %v651
    %v653 = vsub.f32 1.0, %v652
    %v654 = vmul.f32 %v651, %v653
    %v655 = vadd.f32 %v651, %v654
    %vm656 = vweird.f32 %v650
    %vm657 = vweird.f32 %v651
    %vm658 = vmor %vm656, %vm657
    %v659 = vsel %vm658, %v651, %v655
    %v660 = vand.u32 2147483647, %v650
    %vm661 = vcmp.eq.f32.partialorder %v660, 8.507059e+37
    %v662 = vand.u32 %v650, 2147483648
    %v663 = vor.u32 1.1754944e-38, %v662
    %v664 = vsel %vm661, %v663, %v659
    %v665 = vmul.f32 1.0, %v664
    %v666 = vmul.f32 %v645, %v514
    %v667 = vmul.f32 %v626, %v646
    %v668 = vadd.f32 %v666, %v667
    %v669 = vtanh.pop %v668
    %v670 = vmul.f32 %v665, %v669
    %s671 = smul.u32 2, 4
    %s672 = smul.addr %s671, 8
    %s673 = scalar_lea.vmem [#allocation2], %s672
    %v674 = vld [vmem:[%s673] sm:$0xff]
    %v675 = vld [vmem:[%s673 + $0x8] sm:$0xff]
    %v676 = vld [vmem:[%s673 + $0x10] sm:$0xff]
    %v677 = vld [vmem:[%s673 + $0x18] sm:$0xff]
    %678 = vmatpush.msra.mxu0 %v366
    %679 = vmatpush.msra.mxu0 %v362
    %680 = vmatpush.msra.mxu0 %v358
    %681 = vmatpush.msra.mxu0 %v354
    %682 = vmatpush.msra.mxu0 %v350
    %683 = vmatpush.msra.mxu0 %v346
    %684 = vmatpush.msra.mxu0 %v342
    %685 = vmatpush.msra.mxu0 %v338
    %686 = vmatpush.msra.mxu0 %v334
    %687 = vmatpush.msra.mxu0 %v330
    %688 = vmatpush.msra.mxu0 %v326
    %689 = vmatpush.msra.mxu0 %v322
    %690 = vmatpush.msra.mxu0 %v318
    %691 = vmatpush.msra.mxu0 %v314
    %692 = vmatpush.msra.mxu0 %v310
    %693 = vmatpush.msra.mxu0 %v306
    %694 = vmatmul.f32.gmra.mxu0 %v670
    %v695 = vpop.f32.mrf.mxu0
    %v696 = vadd.f32 0.0, %v695
    %697 = vdwg.mxu0
    %698 = vmatpush.msra.mxu0 %v367
    %699 = vmatpush.msra.mxu0 %v363
    %700 = vmatpush.msra.mxu0 %v359
    %701 = vmatpush.msra.mxu0 %v355
    %702 = vmatpush.msra.mxu0 %v351
    %703 = vmatpush.msra.mxu0 %v347
    %704 = vmatpush.msra.mxu0 %v343
    %705 = vmatpush.msra.mxu0 %v339
    %706 = vmatpush.msra.mxu0 %v335
    %707 = vmatpush.msra.mxu0 %v331
    %708 = vmatpush.msra.mxu0 %v327
    %709 = vmatpush.msra.mxu0 %v323
    %710 = vmatpush.msra.mxu0 %v319
    %711 = vmatpush.msra.mxu0 %v315
    %712 = vmatpush.msra.mxu0 %v311
    %713 = vmatpush.msra.mxu0 %v307
    %714 = vmatmul.f32.gmra.mxu0 %v670
    %v715 = vpop.f32.mrf.mxu0
    %v716 = vadd.f32 0.0, %v715
    %717 = vdwg.mxu0
    %718 = vmatpush.msra.mxu0 %v368
    %719 = vmatpush.msra.mxu0 %v364
    %720 = vmatpush.msra.mxu0 %v360
    %721 = vmatpush.msra.mxu0 %v356
    %722 = vmatpush.msra.mxu0 %v352
    %723 = vmatpush.msra.mxu0 %v348
    %724 = vmatpush.msra.mxu0 %v344
    %725 = vmatpush.msra.mxu0 %v340
    %726 = vmatpush.msra.mxu0 %v336
    %727 = vmatpush.msra.mxu0 %v332
    %728 = vmatpush.msra.mxu0 %v328
    %729 = vmatpush.msra.mxu0 %v324
    %730 = vmatpush.msra.mxu0 %v320
    %731 = vmatpush.msra.mxu0 %v316
    %732 = vmatpush.msra.mxu0 %v312
    %733 = vmatpush.msra.mxu0 %v308
    %734 = vmatmul.f32.gmra.mxu0 %v670
    %v735 = vpop.f32.mrf.mxu0
    %v736 = vadd.f32 0.0, %v735
    %737 = vdwg.mxu0
    %738 = vmatpush.msra.mxu0 %v369
    %739 = vmatpush.msra.mxu0 %v365
    %740 = vmatpush.msra.mxu0 %v361
    %741 = vmatpush.msra.mxu0 %v357
    %742 = vmatpush.msra.mxu0 %v353
    %743 = vmatpush.msra.mxu0 %v349
    %744 = vmatpush.msra.mxu0 %v345
    %745 = vmatpush.msra.mxu0 %v341
    %746 = vmatpush.msra.mxu0 %v337
    %747 = vmatpush.msra.mxu0 %v333
    %748 = vmatpush.msra.mxu0 %v329
    %749 = vmatpush.msra.mxu0 %v325
    %750 = vmatpush.msra.mxu0 %v321
    %751 = vmatpush.msra.mxu0 %v317
    %752 = vmatpush.msra.mxu0 %v313
    %753 = vmatpush.msra.mxu0 %v309
    %754 = vmatmul.f32.gmra.mxu0 %v670
    %v755 = vpop.f32.mrf.mxu0
    %v756 = vadd.f32 0.0, %v755
    %757 = vdwg.mxu0
    %v758 = vadd.f32 %v674, %v696
    %v759 = vadd.f32 %v675, %v716
    %v760 = vadd.f32 %v676, %v736
    %v761 = vadd.f32 %v677, %v756
    %v762 = vxor.u32 %v758, 2147483648
    %v763 = vmul.f32 %v762, 1.442695
    %v764 = vpow.pop %v763
    %v765 = vadd.f32 %v764, 1.0
    %v766 = vrcp.pop %v765
    %v767 = vmul.f32 %v765, %v766
    %v768 = vsub.f32 1.0, %v767
    %v769 = vmul.f32 %v766, %v768
    %v770 = vadd.f32 %v766, %v769
    %vm771 = vweird.f32 %v765
    %vm772 = vweird.f32 %v766
    %vm773 = vmor %vm771, %vm772
    %v774 = vsel %vm773, %v766, %v770
    %v775 = vand.u32 2147483647, %v765
    %vm776 = vcmp.eq.f32.partialorder %v775, 8.507059e+37
    %v777 = vand.u32 %v765, 2147483648
    %v778 = vor.u32 1.1754944e-38, %v777
    %v779 = vsel %vm776, %v778, %v774
    %v780 = vmul.f32 1.0, %v779
    %v781 = vxor.u32 %v759, 2147483648
    %v782 = vmul.f32 %v781, 1.442695
    %v783 = vpow.pop %v782
    %v784 = vadd.f32 %v783, 1.0
    %v785 = vrcp.pop %v784
    %v786 = vmul.f32 %v784, %v785
    %v787 = vsub.f32 1.0, %v786
    %v788 = vmul.f32 %v785, %v787
    %v789 = vadd.f32 %v785, %v788
    %vm790 = vweird.f32 %v784
    %vm791 = vweird.f32 %v785
    %vm792 = vmor %vm790, %vm791
    %v793 = vsel %vm792, %v785, %v789
    %v794 = vand.u32 2147483647, %v784
    %vm795 = vcmp.eq.f32.partialorder %v794, 8.507059e+37
    %v796 = vand.u32 %v784, 2147483648
    %v797 = vor.u32 1.1754944e-38, %v796
    %v798 = vsel %vm795, %v797, %v793
    %v799 = vmul.f32 1.0, %v798
    %v800 = vtanh.pop %v760
    %v801 = vxor.u32 %v761, 2147483648
    %v802 = vmul.f32 %v801, 1.442695
    %v803 = vpow.pop %v802
    %v804 = vadd.f32 %v803, 1.0
    %v805 = vrcp.pop %v804
    %v806 = vmul.f32 %v804, %v805
    %v807 = vsub.f32 1.0, %v806
    %v808 = vmul.f32 %v805, %v807
    %v809 = vadd.f32 %v805, %v808
    %vm810 = vweird.f32 %v804
    %vm811 = vweird.f32 %v805
    %vm812 = vmor %vm810, %vm811
    %v813 = vsel %vm812, %v805, %v809
    %v814 = vand.u32 2147483647, %v804
    %vm815 = vcmp.eq.f32.partialorder %v814, 8.507059e+37
    %v816 = vand.u32 %v804, 2147483648
    %v817 = vor.u32 1.1754944e-38, %v816
    %v818 = vsel %vm815, %v817, %v813
    %v819 = vmul.f32 1.0, %v818
    %v820 = vmul.f32 %v799, %v668
    %v821 = vmul.f32 %v780, %v800
    %v822 = vadd.f32 %v820, %v821
    %v823 = vtanh.pop %v822
    %v824 = vmul.f32 %v819, %v823
    %s825 = smul.u32 3, 4
    %s826 = smul.addr %s825, 8
    %s827 = scalar_lea.vmem [#allocation2], %s826
    %v828 = vld [vmem:[%s827] sm:$0xff]
    %v829 = vld [vmem:[%s827 + $0x8] sm:$0xff]
    %v830 = vld [vmem:[%s827 + $0x10] sm:$0xff]
    %v831 = vld [vmem:[%s827 + $0x18] sm:$0xff]
    %832 = vmatpush.msra.mxu0 %v366
    %833 = vmatpush.msra.mxu0 %v362
    %834 = vmatpush.msra.mxu0 %v358
    %835 = vmatpush.msra.mxu0 %v354
    %836 = vmatpush.msra.mxu0 %v350
    %837 = vmatpush.msra.mxu0 %v346
    %838 = vmatpush.msra.mxu0 %v342
    %839 = vmatpush.msra.mxu0 %v338
    %840 = vmatpush.msra.mxu0 %v334
    %841 = vmatpush.msra.mxu0 %v330
    %842 = vmatpush.msra.mxu0 %v326
    %843 = vmatpush.msra.mxu0 %v322
    %844 = vmatpush.msra.mxu0 %v318
    %845 = vmatpush.msra.mxu0 %v314
    %846 = vmatpush.msra.mxu0 %v310
    %847 = vmatpush.msra.mxu0 %v306
    %848 = vmatmul.f32.gmra.mxu0 %v824
    %v849 = vpop.f32.mrf.mxu0
    %v850 = vadd.f32 0.0, %v849
    %851 = vdwg.mxu0
    %852 = vmatpush.msra.mxu0 %v367
    %853 = vmatpush.msra.mxu0 %v363
    %854 = vmatpush.msra.mxu0 %v359
    %855 = vmatpush.msra.mxu0 %v355
    %856 = vmatpush.msra.mxu0 %v351
    %857 = vmatpush.msra.mxu0 %v347
    %858 = vmatpush.msra.mxu0 %v343
    %859 = vmatpush.msra.mxu0 %v339
    %860 = vmatpush.msra.mxu0 %v335
    %861 = vmatpush.msra.mxu0 %v331
    %862 = vmatpush.msra.mxu0 %v327
    %863 = vmatpush.msra.mxu0 %v323
    %864 = vmatpush.msra.mxu0 %v319
    %865 = vmatpush.msra.mxu0 %v315
    %866 = vmatpush.msra.mxu0 %v311
    %867 = vmatpush.msra.mxu0 %v307
    %868 = vmatmul.f32.gmra.mxu0 %v824
    %v869 = vpop.f32.mrf.mxu0
    %v870 = vadd.f32 0.0, %v869
    %871 = vdwg.mxu0
    %872 = vmatpush.msra.mxu0 %v368
    %873 = vmatpush.msra.mxu0 %v364
    %874 = vmatpush.msra.mxu0 %v360
    %875 = vmatpush.msra.mxu0 %v356
    %876 = vmatpush.msra.mxu0 %v352
    %877 = vmatpush.msra.mxu0 %v348
    %878 = vmatpush.msra.mxu0 %v344
    %879 = vmatpush.msra.mxu0 %v340
    %880 = vmatpush.msra.mxu0 %v336
    %881 = vmatpush.msra.mxu0 %v332
    %882 = vmatpush.msra.mxu0 %v328
    %883 = vmatpush.msra.mxu0 %v324
    %884 = vmatpush.msra.mxu0 %v320
    %885 = vmatpush.msra.mxu0 %v316
    %886 = vmatpush.msra.mxu0 %v312
    %887 = vmatpush.msra.mxu0 %v308
    %888 = vmatmul.f32.gmra.mxu0 %v824
    %v889 = vpop.f32.mrf.mxu0
    %v890 = vadd.f32 0.0, %v889
    %891 = vdwg.mxu0
    %892 = vmatpush.msra.mxu0 %v369
    %893 = vmatpush.msra.mxu0 %v365
    %894 = vmatpush.msra.mxu0 %v361
    %895 = vmatpush.msra.mxu0 %v357
    %896 = vmatpush.msra.mxu0 %v353
    %897 = vmatpush.msra.mxu0 %v349
    %898 = vmatpush.msra.mxu0 %v345
    %899 = vmatpush.msra.mxu0 %v341
    %900 = vmatpush.msra.mxu0 %v337
    %901 = vmatpush.msra.mxu0 %v333
    %902 = vmatpush.msra.mxu0 %v329
    %903 = vmatpush.msra.mxu0 %v325
    %904 = vmatpush.msra.mxu0 %v321
    %905 = vmatpush.msra.mxu0 %v317
    %906 = vmatpush.msra.mxu0 %v313
    %907 = vmatpush.msra.mxu0 %v309
    %908 = vmatmul.f32.gmra.mxu0 %v824
    %v909 = vpop.f32.mrf.mxu0
    %v910 = vadd.f32 0.0, %v909
    %911 = vdwg.mxu0
    %v912 = vadd.f32 %v828, %v850
    %v913 = vadd.f32 %v829, %v870
    %v914 = vadd.f32 %v830, %v890
    %v915 = vadd.f32 %v831, %v910
    %v916 = vxor.u32 %v912, 2147483648
    %v917 = vmul.f32 %v916, 1.442695
    %v918 = vpow.pop %v917
    %v919 = vadd.f32 %v918, 1.0
    %v920 = vrcp.pop %v919
    %v921 = vmul.f32 %v919, %v920
    %v922 = vsub.f32 1.0, %v921
    %v923 = vmul.f32 %v920, %v922
    %v924 = vadd.f32 %v920, %v923
    %vm925 = vweird.f32 %v919
    %vm926 = vweird.f32 %v920
    %vm927 = vmor %vm925, %vm926
    %v928 = vsel %vm927, %v920, %v924
    %v929 = vand.u32 2147483647, %v919
    %vm930 = vcmp.eq.f32.partialorder %v929, 8.507059e+37
    %v931 = vand.u32 %v919, 2147483648
    %v932 = vor.u32 1.1754944e-38, %v931
    %v933 = vsel %vm930, %v932, %v928
    %v934 = vmul.f32 1.0, %v933
    %v935 = vxor.u32 %v913, 2147483648
    %v936 = vmul.f32 %v935, 1.442695
    %v937 = vpow.pop %v936
    %v938 = vadd.f32 %v937, 1.0
    %v939 = vrcp.pop %v938
    %v940 = vmul.f32 %v938, %v939
    %v941 = vsub.f32 1.0, %v940
    %v942 = vmul.f32 %v939, %v941
    %v943 = vadd.f32 %v939, %v942
    %vm944 = vweird.f32 %v938
    %vm945 = vweird.f32 %v939
    %vm946 = vmor %vm944, %vm945
    %v947 = vsel %vm946, %v939, %v943
    %v948 = vand.u32 2147483647, %v938
    %vm949 = vcmp.eq.f32.partialorder %v948, 8.507059e+37
    %v950 = vand.u32 %v938, 2147483648
    %v951 = vor.u32 1.1754944e-38, %v950
    %v952 = vsel %vm949, %v951, %v947
    %v953 = vmul.f32 1.0, %v952
    %v954 = vtanh.pop %v914
    %v955 = vxor.u32 %v915, 2147483648
    %v956 = vmul.f32 %v955, 1.442695
    %v957 = vpow.pop %v956
    %v958 = vadd.f32 %v957, 1.0
    %v959 = vrcp.pop %v958
    %v960 = vmul.f32 %v958, %v959
    %v961 = vsub.f32 1.0, %v960
    %v962 = vmul.f32 %v959, %v961
    %v963 = vadd.f32 %v959, %v962
    %vm964 = vweird.f32 %v958
    %vm965 = vweird.f32 %v959
    %vm966 = vmor %vm964, %vm965
    %v967 = vsel %vm966, %v959, %v963
    %v968 = vand.u32 2147483647, %v958
    %vm969 = vcmp.eq.f32.partialorder %v968, 8.507059e+37
    %v970 = vand.u32 %v958, 2147483648
    %v971 = vor.u32 1.1754944e-38, %v970
    %v972 = vsel %vm969, %v971, %v967
    %v973 = vmul.f32 1.0, %v972
    %v974 = vmul.f32 %v953, %v822
    %v975 = vmul.f32 %v934, %v954
    %v976 = vadd.f32 %v974, %v975
    %v977 = vtanh.pop %v976
    %v978 = vmul.f32 %v973, %v977
    %s979 = smul.u32 4, 4
    %s980 = smul.addr %s979, 8
    %s981 = scalar_lea.vmem [#allocation2], %s980
    %v982 = vld [vmem:[%s981] sm:$0xff]
    %v983 = vld [vmem:[%s981 + $0x8] sm:$0xff]
    %v984 = vld [vmem:[%s981 + $0x10] sm:$0xff]
    %v985 = vld [vmem:[%s981 + $0x18] sm:$0xff]
    %986 = vmatpush.msra.mxu0 %v366
    %987 = vmatpush.msra.mxu0 %v362
    %988 = vmatpush.msra.mxu0 %v358
    %989 = vmatpush.msra.mxu0 %v354
    %990 = vmatpush.msra.mxu0 %v350
    %991 = vmatpush.msra.mxu0 %v346
    %992 = vmatpush.msra.mxu0 %v342
    %993 = vmatpush.msra.mxu0 %v338
    %994 = vmatpush.msra.mxu0 %v334
    %995 = vmatpush.msra.mxu0 %v330
    %996 = vmatpush.msra.mxu0 %v326
    %997 = vmatpush.msra.mxu0 %v322
    %998 = vmatpush.msra.mxu0 %v318
    %999 = vmatpush.msra.mxu0 %v314
    %1000 = vmatpush.msra.mxu0 %v310
    %1001 = vmatpush.msra.mxu0 %v306
    %1002 = vmatmul.f32.gmra.mxu0 %v978
    %v1003 = vpop.f32.mrf.mxu0
    %v1004 = vadd.f32 0.0, %v1003
    %1005 = vdwg.mxu0
    %1006 = vmatpush.msra.mxu0 %v367
    %1007 = vmatpush.msra.mxu0 %v363
    %1008 = vmatpush.msra.mxu0 %v359
    %1009 = vmatpush.msra.mxu0 %v355
    %1010 = vmatpush.msra.mxu0 %v351
    %1011 = vmatpush.msra.mxu0 %v347
    %1012 = vmatpush.msra.mxu0 %v343
    %1013 = vmatpush.msra.mxu0 %v339
    %1014 = vmatpush.msra.mxu0 %v335
    %1015 = vmatpush.msra.mxu0 %v331
    %1016 = vmatpush.msra.mxu0 %v327
    %1017 = vmatpush.msra.mxu0 %v323
    %1018 = vmatpush.msra.mxu0 %v319
    %1019 = vmatpush.msra.mxu0 %v315
    %1020 = vmatpush.msra.mxu0 %v311
    %1021 = vmatpush.msra.mxu0 %v307
    %1022 = vmatmul.f32.gmra.mxu0 %v978
    %v1023 = vpop.f32.mrf.mxu0
    %v1024 = vadd.f32 0.0, %v1023
    %1025 = vdwg.mxu0
    %1026 = vmatpush.msra.mxu0 %v368
    %1027 = vmatpush.msra.mxu0 %v364
    %1028 = vmatpush.msra.mxu0 %v360
    %1029 = vmatpush.msra.mxu0 %v356
    %1030 = vmatpush.msra.mxu0 %v352
    %1031 = vmatpush.msra.mxu0 %v348
    %1032 = vmatpush.msra.mxu0 %v344
    %1033 = vmatpush.msra.mxu0 %v340
    %1034 = vmatpush.msra.mxu0 %v336
    %1035 = vmatpush.msra.mxu0 %v332
    %1036 = vmatpush.msra.mxu0 %v328
    %1037 = vmatpush.msra.mxu0 %v324
    %1038 = vmatpush.msra.mxu0 %v320
    %1039 = vmatpush.msra.mxu0 %v316
    %1040 = vmatpush.msra.mxu0 %v312
    %1041 = vmatpush.msra.mxu0 %v308
    %1042 = vmatmul.f32.gmra.mxu0 %v978
    %v1043 = vpop.f32.mrf.mxu0
    %v1044 = vadd.f32 0.0, %v1043
    %1045 = vdwg.mxu0
    %1046 = vmatpush.msra.mxu0 %v369
    %1047 = vmatpush.msra.mxu0 %v365
    %1048 = vmatpush.msra.mxu0 %v361
    %1049 = vmatpush.msra.mxu0 %v357
    %1050 = vmatpush.msra.mxu0 %v353
    %1051 = vmatpush.msra.mxu0 %v349
    %1052 = vmatpush.msra.mxu0 %v345
    %1053 = vmatpush.msra.mxu0 %v341
    %1054 = vmatpush.msra.mxu0 %v337
    %1055 = vmatpush.msra.mxu0 %v333
    %1056 = vmatpush.msra.mxu0 %v329
    %1057 = vmatpush.msra.mxu0 %v325
    %1058 = vmatpush.msra.mxu0 %v321
    %1059 = vmatpush.msra.mxu0 %v317
    %1060 = vmatpush.msra.mxu0 %v313
    %1061 = vmatpush.msra.mxu0 %v309
    %1062 = vmatmul.f32.gmra.mxu0 %v978
    %v1063 = vpop.f32.mrf.mxu0
    %v1064 = vadd.f32 0.0, %v1063
    %1065 = vdwg.mxu0
    %v1066 = vadd.f32 %v982, %v1004
    %v1067 = vadd.f32 %v983, %v1024
    %v1068 = vadd.f32 %v984, %v1044
    %v1069 = vadd.f32 %v985, %v1064
    %v1070 = vxor.u32 %v1066, 2147483648
    %v1071 = vmul.f32 %v1070, 1.442695
    %v1072 = vpow.pop %v1071
    %v1073 = vadd.f32 %v1072, 1.0
    %v1074 = vrcp.pop %v1073
    %v1075 = vmul.f32 %v1073, %v1074
    %v1076 = vsub.f32 1.0, %v1075
    %v1077 = vmul.f32 %v1074, %v1076
    %v1078 = vadd.f32 %v1074, %v1077
    %vm1079 = vweird.f32 %v1073
    %vm1080 = vweird.f32 %v1074
    %vm1081 = vmor %vm1079, %vm1080
    %v1082 = vsel %vm1081, %v1074, %v1078
    %v1083 = vand.u32 2147483647, %v1073
    %vm1084 = vcmp.eq.f32.partialorder %v1083, 8.507059e+37
    %v1085 = vand.u32 %v1073, 2147483648
    %v1086 = vor.u32 1.1754944e-38, %v1085
    %v1087 = vsel %vm1084, %v1086, %v1082
    %v1088 = vmul.f32 1.0, %v1087
    %v1089 = vxor.u32 %v1067, 2147483648
    %v1090 = vmul.f32 %v1089, 1.442695
    %v1091 = vpow.pop %v1090
    %v1092 = vadd.f32 %v1091, 1.0
    %v1093 = vrcp.pop %v1092
    %v1094 = vmul.f32 %v1092, %v1093
    %v1095 = vsub.f32 1.0, %v1094
    %v1096 = vmul.f32 %v1093, %v1095
    %v1097 = vadd.f32 %v1093, %v1096
    %vm1098 = vweird.f32 %v1092
    %vm1099 = vweird.f32 %v1093
    %vm1100 = vmor %vm1098, %vm1099
    %v1101 = vsel %vm1100, %v1093, %v1097
    %v1102 = vand.u32 2147483647, %v1092
    %vm1103 = vcmp.eq.f32.partialorder %v1102, 8.507059e+37
    %v1104 = vand.u32 %v1092, 2147483648
    %v1105 = vor.u32 1.1754944e-38, %v1104
    %v1106 = vsel %vm1103, %v1105, %v1101
    %v1107 = vmul.f32 1.0, %v1106
    %v1108 = vtanh.pop %v1068
    %v1109 = vxor.u32 %v1069, 2147483648
    %v1110 = vmul.f32 %v1109, 1.442695
    %v1111 = vpow.pop %v1110
    %v1112 = vadd.f32 %v1111, 1.0
    %v1113 = vrcp.pop %v1112
    %v1114 = vmul.f32 %v1112, %v1113
    %v1115 = vsub.f32 1.0, %v1114
    %v1116 = vmul.f32 %v1113, %v1115
    %v1117 = vadd.f32 %v1113, %v1116
    %vm1118 = vweird.f32 %v1112
    %vm1119 = vweird.f32 %v1113
    %vm1120 = vmor %vm1118, %vm1119
    %v1121 = vsel %vm1120, %v1113, %v1117
    %v1122 = vand.u32 2147483647, %v1112
    %vm1123 = vcmp.eq.f32.partialorder %v1122, 8.507059e+37
    %v1124 = vand.u32 %v1112, 2147483648
    %v1125 = vor.u32 1.1754944e-38, %v1124
    %v1126 = vsel %vm1123, %v1125, %v1121
    %v1127 = vmul.f32 1.0, %v1126
    %v1128 = vmul.f32 %v1107, %v976
    %v1129 = vmul.f32 %v1088, %v1108
    %v1130 = vadd.f32 %v1128, %v1129
    %v1131 = vtanh.pop %v1130
    %v1132 = vmul.f32 %v1127, %v1131
    %s1133 = smul.u32 5, 4
    %s1134 = smul.addr %s1133, 8
    %s1135 = scalar_lea.vmem [#allocation2], %s1134
    %v1136 = vld [vmem:[%s1135] sm:$0xff]
    %v1137 = vld [vmem:[%s1135 + $0x8] sm:$0xff]
    %v1138 = vld [vmem:[%s1135 + $0x10] sm:$0xff]
    %v1139 = vld [vmem:[%s1135 + $0x18] sm:$0xff]
    %1140 = vmatpush.msra.mxu0 %v366
    %1141 = vmatpush.msra.mxu0 %v362
    %1142 = vmatpush.msra.mxu0 %v358
    %1143 = vmatpush.msra.mxu0 %v354
    %1144 = vmatpush.msra.mxu0 %v350
    %1145 = vmatpush.msra.mxu0 %v346
    %1146 = vmatpush.msra.mxu0 %v342
    %1147 = vmatpush.msra.mxu0 %v338
    %1148 = vmatpush.msra.mxu0 %v334
    %1149 = vmatpush.msra.mxu0 %v330
    %1150 = vmatpush.msra.mxu0 %v326
    %1151 = vmatpush.msra.mxu0 %v322
    %1152 = vmatpush.msra.mxu0 %v318
    %1153 = vmatpush.msra.mxu0 %v314
    %1154 = vmatpush.msra.mxu0 %v310
    %1155 = vmatpush.msra.mxu0 %v306
    %1156 = vmatmul.f32.gmra.mxu0 %v1132
    %v1157 = vpop.f32.mrf.mxu0
    %v1158 = vadd.f32 0.0, %v1157
    %1159 = vdwg.mxu0
    %1160 = vmatpush.msra.mxu0 %v367
    %1161 = vmatpush.msra.mxu0 %v363
    %1162 = vmatpush.msra.mxu0 %v359
    %1163 = vmatpush.msra.mxu0 %v355
    %1164 = vmatpush.msra.mxu0 %v351
    %1165 = vmatpush.msra.mxu0 %v347
    %1166 = vmatpush.msra.mxu0 %v343
    %1167 = vmatpush.msra.mxu0 %v339
    %1168 = vmatpush.msra.mxu0 %v335
    %1169 = vmatpush.msra.mxu0 %v331
    %1170 = vmatpush.msra.mxu0 %v327
    %1171 = vmatpush.msra.mxu0 %v323
    %1172 = vmatpush.msra.mxu0 %v319
    %1173 = vmatpush.msra.mxu0 %v315
    %1174 = vmatpush.msra.mxu0 %v311
    %1175 = vmatpush.msra.mxu0 %v307
    %1176 = vmatmul.f32.gmra.mxu0 %v1132
    %v1177 = vpop.f32.mrf.mxu0
    %v1178 = vadd.f32 0.0, %v1177
    %1179 = vdwg.mxu0
    %1180 = vmatpush.msra.mxu0 %v368
    %1181 = vmatpush.msra.mxu0 %v364
    %1182 = vmatpush.msra.mxu0 %v360
    %1183 = vmatpush.msra.mxu0 %v356
    %1184 = vmatpush.msra.mxu0 %v352
    %1185 = vmatpush.msra.mxu0 %v348
    %1186 = vmatpush.msra.mxu0 %v344
    %1187 = vmatpush.msra.mxu0 %v340
    %1188 = vmatpush.msra.mxu0 %v336
    %1189 = vmatpush.msra.mxu0 %v332
    %1190 = vmatpush.msra.mxu0 %v328
    %1191 = vmatpush.msra.mxu0 %v324
    %1192 = vmatpush.msra.mxu0 %v320
    %1193 = vmatpush.msra.mxu0 %v316
    %1194 = vmatpush.msra.mxu0 %v312
    %1195 = vmatpush.msra.mxu0 %v308
    %1196 = vmatmul.f32.gmra.mxu0 %v1132
    %v1197 = vpop.f32.mrf.mxu0
    %v1198 = vadd.f32 0.0, %v1197
    %1199 = vdwg.mxu0
    %1200 = vmatpush.msra.mxu0 %v369
    %1201 = vmatpush.msra.mxu0 %v365
    %1202 = vmatpush.msra.mxu0 %v361
    %1203 = vmatpush.msra.mxu0 %v357
    %1204 = vmatpush.msra.mxu0 %v353
    %1205 = vmatpush.msra.mxu0 %v349
    %1206 = vmatpush.msra.mxu0 %v345
    %1207 = vmatpush.msra.mxu0 %v341
    %1208 = vmatpush.msra.mxu0 %v337
    %1209 = vmatpush.msra.mxu0 %v333
    %1210 = vmatpush.msra.mxu0 %v329
    %1211 = vmatpush.msra.mxu0 %v325
    %1212 = vmatpush.msra.mxu0 %v321
    %1213 = vmatpush.msra.mxu0 %v317
    %1214 = vmatpush.msra.mxu0 %v313
    %1215 = vmatpush.msra.mxu0 %v309
    %1216 = vmatmul.f32.gmra.mxu0 %v1132
    %v1217 = vpop.f32.mrf.mxu0
    %v1218 = vadd.f32 0.0, %v1217
    %1219 = vdwg.mxu0
    %v1220 = vadd.f32 %v1136, %v1158
    %v1221 = vadd.f32 %v1137, %v1178
    %v1222 = vadd.f32 %v1138, %v1198
    %v1223 = vadd.f32 %v1139, %v1218
    %v1224 = vxor.u32 %v1220, 2147483648
    %v1225 = vmul.f32 %v1224, 1.442695
    %v1226 = vpow.pop %v1225
    %v1227 = vadd.f32 %v1226, 1.0
    %v1228 = vrcp.pop %v1227
    %v1229 = vmul.f32 %v1227, %v1228
    %v1230 = vsub.f32 1.0, %v1229
    %v1231 = vmul.f32 %v1228, %v1230
    %v1232 = vadd.f32 %v1228, %v1231
    %vm1233 = vweird.f32 %v1227
    %vm1234 = vweird.f32 %v1228
    %vm1235 = vmor %vm1233, %vm1234
    %v1236 = vsel %vm1235, %v1228, %v1232
    %v1237 = vand.u32 2147483647, %v1227
    %vm1238 = vcmp.eq.f32.partialorder %v1237, 8.507059e+37
    %v1239 = vand.u32 %v1227, 2147483648
    %v1240 = vor.u32 1.1754944e-38, %v1239
    %v1241 = vsel %vm1238, %v1240, %v1236
    %v1242 = vmul.f32 1.0, %v1241
    %v1243 = vxor.u32 %v1221, 2147483648
    %v1244 = vmul.f32 %v1243, 1.442695
    %v1245 = vpow.pop %v1244
    %v1246 = vadd.f32 %v1245, 1.0
    %v1247 = vrcp.pop %v1246
    %v1248 = vmul.f32 %v1246, %v1247
    %v1249 = vsub.f32 1.0, %v1248
    %v1250 = vmul.f32 %v1247, %v1249
    %v1251 = vadd.f32 %v1247, %v1250
    %vm1252 = vweird.f32 %v1246
    %vm1253 = vweird.f32 %v1247
    %vm1254 = vmor %vm1252, %vm1253
    %v1255 = vsel %vm1254, %v1247, %v1251
    %v1256 = vand.u32 2147483647, %v1246
    %vm1257 = vcmp.eq.f32.partialorder %v1256, 8.507059e+37
    %v1258 = vand.u32 %v1246, 2147483648
    %v1259 = vor.u32 1.1754944e-38, %v1258
    %v1260 = vsel %vm1257, %v1259, %v1255
    %v1261 = vmul.f32 1.0, %v1260
    %v1262 = vtanh.pop %v1222
    %v1263 = vxor.u32 %v1223, 2147483648
    %v1264 = vmul.f32 %v1263, 1.442695
    %v1265 = vpow.pop %v1264
    %v1266 = vadd.f32 %v1265, 1.0
    %v1267 = vrcp.pop %v1266
    %v1268 = vmul.f32 %v1266, %v1267
    %v1269 = vsub.f32 1.0, %v1268
    %v1270 = vmul.f32 %v1267, %v1269
    %v1271 = vadd.f32 %v1267, %v1270
    %vm1272 = vweird.f32 %v1266
    %vm1273 = vweird.f32 %v1267
    %vm1274 = vmor %vm1272, %vm1273
    %v1275 = vsel %vm1274, %v1267, %v1271
    %v1276 = vand.u32 2147483647, %v1266
    %vm1277 = vcmp.eq.f32.partialorder %v1276, 8.507059e+37
    %v1278 = vand.u32 %v1266, 2147483648
    %v1279 = vor.u32 1.1754944e-38, %v1278
    %v1280 = vsel %vm1277, %v1279, %v1275
    %v1281 = vmul.f32 1.0, %v1280
    %v1282 = vmul.f32 %v1261, %v1130
    %v1283 = vmul.f32 %v1242, %v1262
    %v1284 = vadd.f32 %v1282, %v1283
    %v1285 = vtanh.pop %v1284
    %v1286 = vmul.f32 %v1281, %v1285
    %s1287 = smul.u32 6, 4
    %s1288 = smul.addr %s1287, 8
    %s1289 = scalar_lea.vmem [#allocation2], %s1288
    %v1290 = vld [vmem:[%s1289] sm:$0xff]
    %v1291 = vld [vmem:[%s1289 + $0x8] sm:$0xff]
    %v1292 = vld [vmem:[%s1289 + $0x10] sm:$0xff]
    %v1293 = vld [vmem:[%s1289 + $0x18] sm:$0xff]
    %1294 = vmatpush.msra.mxu0 %v366
    %1295 = vmatpush.msra.mxu0 %v362
    %1296 = vmatpush.msra.mxu0 %v358
    %1297 = vmatpush.msra.mxu0 %v354
    %1298 = vmatpush.msra.mxu0 %v350
    %1299 = vmatpush.msra.mxu0 %v346
    %1300 = vmatpush.msra.mxu0 %v342
    %1301 = vmatpush.msra.mxu0 %v338
    %1302 = vmatpush.msra.mxu0 %v334
    %1303 = vmatpush.msra.mxu0 %v330
    %1304 = vmatpush.msra.mxu0 %v326
    %1305 = vmatpush.msra.mxu0 %v322
    %1306 = vmatpush.msra.mxu0 %v318
    %1307 = vmatpush.msra.mxu0 %v314
    %1308 = vmatpush.msra.mxu0 %v310
    %1309 = vmatpush.msra.mxu0 %v306
    %1310 = vmatmul.f32.gmra.mxu0 %v1286
    %v1311 = vpop.f32.mrf.mxu0
    %v1312 = vadd.f32 0.0, %v1311
    %1313 = vdwg.mxu0
    %1314 = vmatpush.msra.mxu0 %v367
    %1315 = vmatpush.msra.mxu0 %v363
    %1316 = vmatpush.msra.mxu0 %v359
    %1317 = vmatpush.msra.mxu0 %v355
    %1318 = vmatpush.msra.mxu0 %v351
    %1319 = vmatpush.msra.mxu0 %v347
    %1320 = vmatpush.msra.mxu0 %v343
    %1321 = vmatpush.msra.mxu0 %v339
    %1322 = vmatpush.msra.mxu0 %v335
    %1323 = vmatpush.msra.mxu0 %v331
    %1324 = vmatpush.msra.mxu0 %v327
    %1325 = vmatpush.msra.mxu0 %v323
    %1326 = vmatpush.msra.mxu0 %v319
    %1327 = vmatpush.msra.mxu0 %v315
    %1328 = vmatpush.msra.mxu0 %v311
    %1329 = vmatpush.msra.mxu0 %v307
    %1330 = vmatmul.f32.gmra.mxu0 %v1286
    %v1331 = vpop.f32.mrf.mxu0
    %v1332 = vadd.f32 0.0, %v1331
    %1333 = vdwg.mxu0
    %1334 = vmatpush.msra.mxu0 %v368
    %1335 = vmatpush.msra.mxu0 %v364
    %1336 = vmatpush.msra.mxu0 %v360
    %1337 = vmatpush.msra.mxu0 %v356
    %1338 = vmatpush.msra.mxu0 %v352
    %1339 = vmatpush.msra.mxu0 %v348
    %1340 = vmatpush.msra.mxu0 %v344
    %1341 = vmatpush.msra.mxu0 %v340
    %1342 = vmatpush.msra.mxu0 %v336
    %1343 = vmatpush.msra.mxu0 %v332
    %1344 = vmatpush.msra.mxu0 %v328
    %1345 = vmatpush.msra.mxu0 %v324
    %1346 = vmatpush.msra.mxu0 %v320
    %1347 = vmatpush.msra.mxu0 %v316
    %1348 = vmatpush.msra.mxu0 %v312
    %1349 = vmatpush.msra.mxu0 %v308
    %1350 = vmatmul.f32.gmra.mxu0 %v1286
    %v1351 = vpop.f32.mrf.mxu0
    %v1352 = vadd.f32 0.0, %v1351
    %1353 = vdwg.mxu0
    %1354 = vmatpush.msra.mxu0 %v369
    %1355 = vmatpush.msra.mxu0 %v365
    %1356 = vmatpush.msra.mxu0 %v361
    %1357 = vmatpush.msra.mxu0 %v357
    %1358 = vmatpush.msra.mxu0 %v353
    %1359 = vmatpush.msra.mxu0 %v349
    %1360 = vmatpush.msra.mxu0 %v345
    %1361 = vmatpush.msra.mxu0 %v341
    %1362 = vmatpush.msra.mxu0 %v337
    %1363 = vmatpush.msra.mxu0 %v333
    %1364 = vmatpush.msra.mxu0 %v329
    %1365 = vmatpush.msra.mxu0 %v325
    %1366 = vmatpush.msra.mxu0 %v321
    %1367 = vmatpush.msra.mxu0 %v317
    %1368 = vmatpush.msra.mxu0 %v313
    %1369 = vmatpush.msra.mxu0 %v309
    %1370 = vmatmul.f32.gmra.mxu0 %v1286
    %v1371 = vpop.f32.mrf.mxu0
    %v1372 = vadd.f32 0.0, %v1371
    %1373 = vdwg.mxu0
    %v1374 = vadd.f32 %v1290, %v1312
    %v1375 = vadd.f32 %v1291, %v1332
    %v1376 = vadd.f32 %v1292, %v1352
    %v1377 = vadd.f32 %v1293, %v1372
    %v1378 = vxor.u32 %v1374, 2147483648
    %v1379 = vmul.f32 %v1378, 1.442695
    %v1380 = vpow.pop %v1379
    %v1381 = vadd.f32 %v1380, 1.0
    %v1382 = vrcp.pop %v1381
    %v1383 = vmul.f32 %v1381, %v1382
    %v1384 = vsub.f32 1.0, %v1383
    %v1385 = vmul.f32 %v1382, %v1384
    %v1386 = vadd.f32 %v1382, %v1385
    %vm1387 = vweird.f32 %v1381
    %vm1388 = vweird.f32 %v1382
    %vm1389 = vmor %vm1387, %vm1388
    %v1390 = vsel %vm1389, %v1382, %v1386
    %v1391 = vand.u32 2147483647, %v1381
    %vm1392 = vcmp.eq.f32.partialorder %v1391, 8.507059e+37
    %v1393 = vand.u32 %v1381, 2147483648
    %v1394 = vor.u32 1.1754944e-38, %v1393
    %v1395 = vsel %vm1392, %v1394, %v1390
    %v1396 = vmul.f32 1.0, %v1395
    %v1397 = vxor.u32 %v1375, 2147483648
    %v1398 = vmul.f32 %v1397, 1.442695
    %v1399 = vpow.pop %v1398
    %v1400 = vadd.f32 %v1399, 1.0
    %v1401 = vrcp.pop %v1400
    %v1402 = vmul.f32 %v1400, %v1401
    %v1403 = vsub.f32 1.0, %v1402
    %v1404 = vmul.f32 %v1401, %v1403
    %v1405 = vadd.f32 %v1401, %v1404
    %vm1406 = vweird.f32 %v1400
    %vm1407 = vweird.f32 %v1401
    %vm1408 = vmor %vm1406, %vm1407
    %v1409 = vsel %vm1408, %v1401, %v1405
    %v1410 = vand.u32 2147483647, %v1400
    %vm1411 = vcmp.eq.f32.partialorder %v1410, 8.507059e+37
    %v1412 = vand.u32 %v1400, 2147483648
    %v1413 = vor.u32 1.1754944e-38, %v1412
    %v1414 = vsel %vm1411, %v1413, %v1409
    %v1415 = vmul.f32 1.0, %v1414
    %v1416 = vtanh.pop %v1376
    %v1417 = vxor.u32 %v1377, 2147483648
    %v1418 = vmul.f32 %v1417, 1.442695
    %v1419 = vpow.pop %v1418
    %v1420 = vadd.f32 %v1419, 1.0
    %v1421 = vrcp.pop %v1420
    %v1422 = vmul.f32 %v1420, %v1421
    %v1423 = vsub.f32 1.0, %v1422
    %v1424 = vmul.f32 %v1421, %v1423
    %v1425 = vadd.f32 %v1421, %v1424
    %vm1426 = vweird.f32 %v1420
    %vm1427 = vweird.f32 %v1421
    %vm1428 = vmor %vm1426, %vm1427
    %v1429 = vsel %vm1428, %v1421, %v1425
    %v1430 = vand.u32 2147483647, %v1420
    %vm1431 = vcmp.eq.f32.partialorder %v1430, 8.507059e+37
    %v1432 = vand.u32 %v1420, 2147483648
    %v1433 = vor.u32 1.1754944e-38, %v1432
    %v1434 = vsel %vm1431, %v1433, %v1429
    %v1435 = vmul.f32 1.0, %v1434
    %v1436 = vmul.f32 %v1415, %v1284
    %v1437 = vmul.f32 %v1396, %v1416
    %v1438 = vadd.f32 %v1436, %v1437
    %v1439 = vtanh.pop %v1438
    %v1440 = vmul.f32 %v1435, %v1439
    %s1441 = smul.u32 7, 4
    %s1442 = smul.addr %s1441, 8
    %s1443 = scalar_lea.vmem [#allocation2], %s1442
    %v1444 = vld [vmem:[%s1443] sm:$0xff]
    %v1445 = vld [vmem:[%s1443 + $0x8] sm:$0xff]
    %v1446 = vld [vmem:[%s1443 + $0x10] sm:$0xff]
    %v1447 = vld [vmem:[%s1443 + $0x18] sm:$0xff]
    %1448 = vmatpush.msra.mxu0 %v366
    %1449 = vmatpush.msra.mxu0 %v362
    %1450 = vmatpush.msra.mxu0 %v358
    %1451 = vmatpush.msra.mxu0 %v354
    %1452 = vmatpush.msra.mxu0 %v350
    %1453 = vmatpush.msra.mxu0 %v346
    %1454 = vmatpush.msra.mxu0 %v342
    %1455 = vmatpush.msra.mxu0 %v338
    %1456 = vmatpush.msra.mxu0 %v334
    %1457 = vmatpush.msra.mxu0 %v330
    %1458 = vmatpush.msra.mxu0 %v326
    %1459 = vmatpush.msra.mxu0 %v322
    %1460 = vmatpush.msra.mxu0 %v318
    %1461 = vmatpush.msra.mxu0 %v314
    %1462 = vmatpush.msra.mxu0 %v310
    %1463 = vmatpush.msra.mxu0 %v306
    %1464 = vmatmul.f32.gmra.mxu0 %v1440
    %v1465 = vpop.f32.mrf.mxu0
    %v1466 = vadd.f32 0.0, %v1465
    %1467 = vdwg.mxu0
    %1468 = vmatpush.msra.mxu0 %v367
    %1469 = vmatpush.msra.mxu0 %v363
    %1470 = vmatpush.msra.mxu0 %v359
    %1471 = vmatpush.msra.mxu0 %v355
    %1472 = vmatpush.msra.mxu0 %v351
    %1473 = vmatpush.msra.mxu0 %v347
    %1474 = vmatpush.msra.mxu0 %v343
    %1475 = vmatpush.msra.mxu0 %v339
    %1476 = vmatpush.msra.mxu0 %v335
    %1477 = vmatpush.msra.mxu0 %v331
    %1478 = vmatpush.msra.mxu0 %v327
    %1479 = vmatpush.msra.mxu0 %v323
    %1480 = vmatpush.msra.mxu0 %v319
    %1481 = vmatpush.msra.mxu0 %v315
    %1482 = vmatpush.msra.mxu0 %v311
    %1483 = vmatpush.msra.mxu0 %v307
    %1484 = vmatmul.f32.gmra.mxu0 %v1440
    %v1485 = vpop.f32.mrf.mxu0
    %v1486 = vadd.f32 0.0, %v1485
    %1487 = vdwg.mxu0
    %1488 = vmatpush.msra.mxu0 %v368
    %1489 = vmatpush.msra.mxu0 %v364
    %1490 = vmatpush.msra.mxu0 %v360
    %1491 = vmatpush.msra.mxu0 %v356
    %1492 = vmatpush.msra.mxu0 %v352
    %1493 = vmatpush.msra.mxu0 %v348
    %1494 = vmatpush.msra.mxu0 %v344
    %1495 = vmatpush.msra.mxu0 %v340
    %1496 = vmatpush.msra.mxu0 %v336
    %1497 = vmatpush.msra.mxu0 %v332
    %1498 = vmatpush.msra.mxu0 %v328
    %1499 = vmatpush.msra.mxu0 %v324
    %1500 = vmatpush.msra.mxu0 %v320
    %1501 = vmatpush.msra.mxu0 %v316
    %1502 = vmatpush.msra.mxu0 %v312
    %1503 = vmatpush.msra.mxu0 %v308
    %1504 = vmatmul.f32.gmra.mxu0 %v1440
    %v1505 = vpop.f32.mrf.mxu0
    %v1506 = vadd.f32 0.0, %v1505
    %1507 = vdwg.mxu0
    %1508 = vmatpush.msra.mxu0 %v369
    %1509 = vmatpush.msra.mxu0 %v365
    %1510 = vmatpush.msra.mxu0 %v361
    %1511 = vmatpush.msra.mxu0 %v357
    %1512 = vmatpush.msra.mxu0 %v353
    %1513 = vmatpush.msra.mxu0 %v349
    %1514 = vmatpush.msra.mxu0 %v345
    %1515 = vmatpush.msra.mxu0 %v341
    %1516 = vmatpush.msra.mxu0 %v337
    %1517 = vmatpush.msra.mxu0 %v333
    %1518 = vmatpush.msra.mxu0 %v329
    %1519 = vmatpush.msra.mxu0 %v325
    %1520 = vmatpush.msra.mxu0 %v321
    %1521 = vmatpush.msra.mxu0 %v317
    %1522 = vmatpush.msra.mxu0 %v313
    %1523 = vmatpush.msra.mxu0 %v309
    %1524 = vmatmul.f32.gmra.mxu0 %v1440
    %v1525 = vpop.f32.mrf.mxu0
    %v1526 = vadd.f32 0.0, %v1525
    %1527 = vdwg.mxu0
    %v1528 = vadd.f32 %v1444, %v1466
    %v1529 = vadd.f32 %v1445, %v1486
    %v1530 = vadd.f32 %v1446, %v1506
    %v1531 = vadd.f32 %v1447, %v1526
    %v1532 = vxor.u32 %v1528, 2147483648
    %v1533 = vmul.f32 %v1532, 1.442695
    %v1534 = vpow.pop %v1533
    %v1535 = vadd.f32 %v1534, 1.0
    %v1536 = vrcp.pop %v1535
    %v1537 = vmul.f32 %v1535, %v1536
    %v1538 = vsub.f32 1.0, %v1537
    %v1539 = vmul.f32 %v1536, %v1538
    %v1540 = vadd.f32 %v1536, %v1539
    %vm1541 = vweird.f32 %v1535
    %vm1542 = vweird.f32 %v1536
    %vm1543 = vmor %vm1541, %vm1542
    %v1544 = vsel %vm1543, %v1536, %v1540
    %v1545 = vand.u32 2147483647, %v1535
    %vm1546 = vcmp.eq.f32.partialorder %v1545, 8.507059e+37
    %v1547 = vand.u32 %v1535, 2147483648
    %v1548 = vor.u32 1.1754944e-38, %v1547
    %v1549 = vsel %vm1546, %v1548, %v1544
    %v1550 = vmul.f32 1.0, %v1549
    %v1551 = vxor.u32 %v1529, 2147483648
    %v1552 = vmul.f32 %v1551, 1.442695
    %v1553 = vpow.pop %v1552
    %v1554 = vadd.f32 %v1553, 1.0
    %v1555 = vrcp.pop %v1554
    %v1556 = vmul.f32 %v1554, %v1555
    %v1557 = vsub.f32 1.0, %v1556
    %v1558 = vmul.f32 %v1555, %v1557
    %v1559 = vadd.f32 %v1555, %v1558
    %vm1560 = vweird.f32 %v1554
    %vm1561 = vweird.f32 %v1555
    %vm1562 = vmor %vm1560, %vm1561
    %v1563 = vsel %vm1562, %v1555, %v1559
    %v1564 = vand.u32 2147483647, %v1554
    %vm1565 = vcmp.eq.f32.partialorder %v1564, 8.507059e+37
    %v1566 = vand.u32 %v1554, 2147483648
    %v1567 = vor.u32 1.1754944e-38, %v1566
    %v1568 = vsel %vm1565, %v1567, %v1563
    %v1569 = vmul.f32 1.0, %v1568
    %v1570 = vtanh.pop %v1530
    %v1571 = vxor.u32 %v1531, 2147483648
    %v1572 = vmul.f32 %v1571, 1.442695
    %v1573 = vpow.pop %v1572
    %v1574 = vadd.f32 %v1573, 1.0
    %v1575 = vrcp.pop %v1574
    %v1576 = vmul.f32 %v1574, %v1575
    %v1577 = vsub.f32 1.0, %v1576
    %v1578 = vmul.f32 %v1575, %v1577
    %v1579 = vadd.f32 %v1575, %v1578
    %vm1580 = vweird.f32 %v1574
    %vm1581 = vweird.f32 %v1575
    %vm1582 = vmor %vm1580, %vm1581
    %v1583 = vsel %vm1582, %v1575, %v1579
    %v1584 = vand.u32 2147483647, %v1574
    %vm1585 = vcmp.eq.f32.partialorder %v1584, 8.507059e+37
    %v1586 = vand.u32 %v1574, 2147483648
    %v1587 = vor.u32 1.1754944e-38, %v1586
    %v1588 = vsel %vm1585, %v1587, %v1583
    %v1589 = vmul.f32 1.0, %v1588
    %v1590 = vmul.f32 %v1569, %v1438
    %v1591 = vmul.f32 %v1550, %v1570
    %v1592 = vadd.f32 %v1590, %v1591
    %v1593 = vtanh.pop %v1592
    %v1594 = vmul.f32 %v1589, %v1593
    %v1595 = vld [vmem:[#allocation6] sm:$0xff]
    %v1596 = vld [vmem:[#allocation6 + $0x8] sm:$0xff]
    %v1597 = vld [vmem:[#allocation6 + $0x10] sm:$0xff]
    %v1598 = vld [vmem:[#allocation6 + $0x18] sm:$0xff]
    %v1599 = vld [vmem:[#allocation6 + $0x20] sm:$0xff]
    %v1600 = vld [vmem:[#allocation6 + $0x28] sm:$0xff]
    %v1601 = vld [vmem:[#allocation6 + $0x30] sm:$0xff]
    %v1602 = vld [vmem:[#allocation6 + $0x38] sm:$0xff]
    %v1603 = vld [vmem:[#allocation6 + $0x40] sm:$0xff]
    %v1604 = vld [vmem:[#allocation6 + $0x48] sm:$0xff]
    %v1605 = vld [vmem:[#allocation6 + $0x50] sm:$0xff]
    %v1606 = vld [vmem:[#allocation6 + $0x58] sm:$0xff]
    %v1607 = vld [vmem:[#allocation6 + $0x60] sm:$0xff]
    %v1608 = vld [vmem:[#allocation6 + $0x68] sm:$0xff]
    %v1609 = vld [vmem:[#allocation6 + $0x70] sm:$0xff]
    %v1610 = vld [vmem:[#allocation6 + $0x78] sm:$0xff]
    %v1611 = vld [vmem:[%s5] sm:$0x1]
    %v1613 = vperm.slane %v1611, 0
    %1615 = vmatpush.msra.mxu0 %v1610
    %1616 = vmatpush.msra.mxu0 %v1609
    %1617 = vmatpush.msra.mxu0 %v1608
    %1618 = vmatpush.msra.mxu0 %v1607
    %1619 = vmatpush.msra.mxu0 %v1606
    %1620 = vmatpush.msra.mxu0 %v1605
    %1621 = vmatpush.msra.mxu0 %v1604
    %1622 = vmatpush.msra.mxu0 %v1603
    %1623 = vmatpush.msra.mxu0 %v1602
    %1624 = vmatpush.msra.mxu0 %v1601
    %1625 = vmatpush.msra.mxu0 %v1600
    %1626 = vmatpush.msra.mxu0 %v1599
    %1627 = vmatpush.msra.mxu0 %v1598
    %1628 = vmatpush.msra.mxu0 %v1597
    %1629 = vmatpush.msra.mxu0 %v1596
    %1630 = vmatpush.msra.mxu0 %v1595
    %1631 = vmatmul.f32.gmra.mxu0 %v1594
    %v1632 = vpop.f32.mrf.mxu0
    %v1633 = vadd.f32 %v1613, %v1632
    %1634 = vdwg.mxu0
    %v1635 = vxor.u32 %v1633, 2147483648
    %v1636 = vmul.f32 %v1635, 1.442695
    %v1637 = vpow.pop %v1636
    %v1638 = vadd.f32 %v1637, 1.0
    %v1639 = vrcp.pop %v1638
    %v1640 = vmul.f32 %v1638, %v1639
    %v1641 = vsub.f32 1.0, %v1640
    %v1642 = vmul.f32 %v1639, %v1641
    %v1643 = vadd.f32 %v1639, %v1642
    %vm1644 = vweird.f32 %v1638
    %vm1645 = vweird.f32 %v1639
    %vm1646 = vmor %vm1644, %vm1645
    %v1647 = vsel %vm1646, %v1639, %v1643
    %v1648 = vand.u32 2147483647, %v1638
    %vm1649 = vcmp.eq.f32.partialorder %v1648, 8.507059e+37
    %v1650 = vand.u32 %v1638, 2147483648
    %v1651 = vor.u32 1.1754944e-38, %v1650
    %v1652 = vsel %vm1649, %v1651, %v1647
    %v1653 = vmul.f32 1.0, %v1652
    %1654 = vst [vmem:[#allocation8] sm:$0xff] %v1653
    // Predicated region
    $region34: #{tpu_custom_call.1} parent=1 // pred_check
      _
    $region35: #{tpu_custom_call.1} parent=1 // pred_check_branch
      %1656 = sbr.rel (0) target = $region37
    $region36: #{tpu_custom_call.1} parent=1 // pred_region
      %1658 = vsyncadd [#allocation5], 0
      %s1660 = sshll.u32 [#allocation8], 4
      %s1661 = int_to_ptr.vmem [resolvable:$true] %s1660
      %s1662 = sshll.u32 %s6, 4
      %s1663 = int_to_ptr.hbm [resolvable:$true] %s1662
      %1665 = dma.vmem_to_hbm [thread:$0]  %s1661, 128, %s1663, [#allocation5]
    $region37: #{tpu_custom_call.1} parent=1 // pred_fallthru
      _
    // Predicated region
    $region38: #{tpu_custom_call.1} parent=1 // pred_check
      _
    $region39: #{tpu_custom_call.1} parent=1 // pred_check_branch
      %1667 = sbr.rel (0) target = $region41
    $region40: #{tpu_custom_call.1} parent=1 // pred_region
      %1669 = dma.done [#allocation5], 128
    $region41: #{tpu_custom_call.1} parent=1 // pred_fallthru
      _
    %1670 = vsyncpa [#allocation4], 1
    %1671 = vsyncpa [#allocation7], 1
    %1672 = vsyncpa [#allocation5], 1

</llo_original>
